<compile_context>
chip_gen: v7x
topology: tpu7x:2x2x1
jax: 0.10.0
libtpu: 0.0.40
codegen_flags: <defaults>
</compile_context>

<pallas_src>
import functools

import jax
import jax.numpy as jnp
import numpy as np
from jax.experimental import pallas as pl
from jax.experimental.pallas import tpu as pltpu

_EPS = 1e-5                      # PyTorch BatchNorm1d default eps
_NEG = -1.0e30                   # softmax mask bias for padded lanes (relies on exp underflow)
_LANE = 128
_VMEM_LIMIT = 48 * 1024 * 1024   # explicit scoped-VMEM limit (safe on v5e/v6e/v7x)
_TILE_BUDGET = 24 * 1024 * 1024  # VMEM budget for the per-batch-tile working set


def _round_up(n, m):
    return ((n + m - 1) // m) * m


def _pad_cols(a, width, value=0.0):
    pad = width - a.shape[-1]
    if pad == 0:
        return a
    return jnp.pad(a, ((0, 0), (0, pad)), constant_values=value)


def _pad_rows(a, height, value=0.0):
    pad = height - a.shape[0]
    if pad == 0:
        return a
    return jnp.pad(a, ((0, pad), (0, 0)), constant_values=value)


def _crop(a, rows, cols):
    if a.shape[0] == rows and a.shape[1] == cols:
        return a                  # skip the slice when it would be a no-op
    return a[:rows, :cols]


def _softmax_recip(d):
    # EUP approx reciprocal (co-issued slot) + one Newton-Raphson refinement so
    # the approximation error does not compound through the chained softmaxes.
    r = pl.reciprocal(d, approx=True)
    return r * (2.0 - d * r)


# ----------------------------------------------------------------------------
# Kernel: matmul (bf16 in / f32 acc) + ReLU + softmax on BN-folded, lane-padded
# operands.  Weights are grid-resident (constant index_map).
# ----------------------------------------------------------------------------
def aae_fused_kernel(
    x_ref,                         # (TB, Din)                    f32
    w_ein_ref, b_ein_ref,          # encoder input Linear         bf16 / f32
    w_zy_ref, b_zy_ref,            # fused z_block|y_block        bf16 / f32 (+mask bias)
    w_yp_ref, b_yp_ref,            # y_predictor                  bf16 / f32 (+mask bias)
    w_d_ref, b_d_ref,              # decoder input (K = Lp+Lyp)   bf16 / f32
    w_do_ref, b_do_ref,            # decoder output (BN_d folded) bf16 / f32
    xrec_ref, z_ref, y_ref,        # outputs (lane-padded)        f32
    *, lp,
):
    f32 = jnp.float32
    bf16 = jnp.bfloat16

    # encoder input block: Linear -> ReLU  (Dropout = id, BN_e folded downstream)
    xb = x_ref[...].astype(bf16)
    h = jnp.dot(xb, w_ein_ref[...], preferred_element_type=f32) + b_ein_ref[...]
    h = jnp.maximum(h, 0.0)

    # fused z_block + y_block: one matmul over the concatenated RHS, split at
    # the 128-lane boundary.  Padded y lanes carry a -1e30 bias -> exp == 0.
    zy = jnp.dot(h.astype(bf16), w_zy_ref[...], preferred_element_type=f32) + b_zy_ref[...]
    z = zy[:, :lp]
    ylog = zy[:, lp:]

    ylog = ylog - jnp.max(ylog, axis=-1, keepdims=True)
    ye = jnp.exp(ylog)
    _y = ye * _softmax_recip(jnp.sum(ye, axis=-1, keepdims=True))

    # y_predictor: Linear -> Softmax
    plog = jnp.dot(_y.astype(bf16), w_yp_ref[...], preferred_element_type=f32) + b_yp_ref[...]
    plog = plog - jnp.max(plog, axis=-1, keepdims=True)
    pe = jnp.exp(plog)
    y_ = pe * _softmax_recip(jnp.sum(pe, axis=-1, keepdims=True))

    # decoder input block: single K=(Lp+Lyp) contraction on cat(z, _y)
    # (Dropout = id, BN_d folded downstream)
    zy_act = jnp.concatenate([z, _y], axis=-1).astype(bf16)
    hd = jnp.dot(zy_act, w_d_ref[...], preferred_element_type=f32) + b_d_ref[...]
    hd = jnp.maximum(hd, 0.0)

    # decoder output block: Linear -> ReLU  (BN_d folded into W/b)
    xr = jnp.dot(hd.astype(bf16), w_do_ref[...], preferred_element_type=f32) + b_do_ref[...]
    xr = jnp.maximum(xr, 0.0)

    # lane-dense (multiple-of-128) unmasked stores
    xrec_ref[...] = xr
    z_ref[...] = z
    y_ref[...] = y_


# ----------------------------------------------------------------------------
# Batch-tile selection: VMEM-budgeted, >=2 grid steps (v7x megacore), and
# prefer tiles that divide B so host-side batch padding is a no-op.
# ----------------------------------------------------------------------------
def _pick_batch_tile(B, block_b, Din, H, Lp, Lyp, Cp, Dp):
    if B <= 8:
        return B                           # single tile == full batch dim (allowed)
    per_row = 4 * (2 * Din                 # x tile (double-buffered)
                   + 2 * (Dp + Lp + Cp)    # output tiles (double-buffered)
                   + 2 * H                 # h, hd
                   + 3 * (Lp + Lyp)        # zy, cat(z,_y), exp scratch
                   + 2 * Cp)               # pe, y_
    tb_vmem = max(8, (_TILE_BUDGET // per_row) // 8 * 8)
    tb_cap = min(max(8, (block_b // 8) * 8),
                 tb_vmem,
                 max(8, _round_up((B + 1) // 2, 8)))   # >= 2 grid steps
    for cand in range(tb_cap, 7, -8):
        if B % cand == 0:
            return cand                    # no batch padding needed
    return tb_cap                          # fall back to padding the last tile


# ----------------------------------------------------------------------------
# Wrapper: host-side BN folding (f32), weight fusion/pre-split, lane padding,
# bf16 casts, batch tiling.
# ----------------------------------------------------------------------------
def semi_sup_aae_forward(x, params, *, block_b=512):
    """Fused semi_sup_AAE forward. Returns (x_, z, y_)."""
    (w_ein, b_ein, g_e, be_e, rm_e, rv_e,
     w_z, b_z, w_y, b_y, w_yp, b_yp,
     w_din, b_din, g_d, be_d, rm_d, rv_d,
     w_dout, b_dout) = [jnp.asarray(p, jnp.float32) for p in params]

    x = jnp.asarray(x, jnp.float32)
    B, Din = x.shape
    H = w_ein.shape[1]
    L = w_z.shape[1]        # latent_dim (z width)
    Ly = w_y.shape[1]       # y_block output width (latent_dim per module spec)
    C = w_yp.shape[1]       # n_classes
    Dout = w_dout.shape[1]

    Lp = _round_up(L, _LANE)
    Lyp = _round_up(Ly, _LANE)
    Cp = _round_up(C, _LANE)
    Dp = _round_up(Dout, _LANE)

    # --- fold eval-mode BatchNorms into the following Linears (f32) ---------
    g_e, be_e, rm_e, rv_e = (a.reshape(-1) for a in (g_e, be_e, rm_e, rv_e))
    g_d, be_d, rm_d, rv_d = (a.reshape(-1) for a in (g_d, be_d, rm_d, rv_d))
    b_ein, b_z, b_y, b_yp, b_din, b_dout = (
        a.reshape(-1) for a in (b_ein, b_z, b_y, b_yp, b_din, b_dout))

    s_e = g_e * jax.lax.rsqrt(rv_e + _EPS)
    t_e = be_e - rm_e * s_e
    s_d = g_d * jax.lax.rsqrt(rv_d + _EPS)
    t_d = be_d - rm_d * s_d

    w_zf = w_z * s_e[:, None]
    b_zf = t_e @ w_z + b_z
    w_yf = w_y * s_e[:, None]
    b_yf = t_e @ w_y + b_y
    w_dof = w_dout * s_d[:, None]
    b_dof = t_d @ w_dout + b_dout

    # --- fused / padded / bf16 operands --------------------------------------
    bf16 = jnp.bfloat16
    # fused z|y RHS: (H, Lp+Lyp); padded y lanes masked via -1e30 bias
    w_zy = jnp.concatenate([_pad_cols(w_zf, Lp), _pad_cols(w_yf, Lyp)], axis=1).astype(bf16)
    b_zy = jnp.concatenate([_pad_cols(b_zf[None, :], Lp),
                            _pad_cols(b_yf[None, :], Lyp, value=_NEG)], axis=1)
    # y_predictor: (Lyp, Cp)
    w_yp_p = _pad_rows(_pad_cols(w_yp, Cp), Lyp).astype(bf16)
    b_yp_p = _pad_cols(b_yp[None, :], Cp, value=_NEG)
    # decoder input: single (Lp+Lyp, H) weight aligned with cat(z, _y) lanes
    w_d = jnp.concatenate([_pad_rows(w_din[:L, :], Lp),
                           _pad_rows(w_din[L:L + Ly, :], Lyp)], axis=0).astype(bf16)
    b_d = b_din[None, :]
    # decoder output: (H, Dp)
    w_do = _pad_cols(w_dof, Dp).astype(bf16)
    b_do = _pad_cols(b_dof[None, :], Dp)
    # encoder input
    w_ein_b = w_ein.astype(bf16)
    b_ein2 = b_ein[None, :]

    # --- batch tiling --------------------------------------------------------
    tb = _pick_batch_tile(B, block_b, Din, H, Lp, Lyp, Cp, Dp)
    Bp = _round_up(B, tb)
    x_p = x if Bp == B else jnp.pad(x, ((0, Bp - B), (0, 0)))
    grid = (Bp // tb,)

    weights = (w_ein_b, b_ein2, w_zy, b_zy, w_yp_p, b_yp_p, w_d, b_d, w_do, b_do)

    in_specs = [pl.BlockSpec((tb, Din), lambda i: (i, 0))]
    # weights/biases: constant index_map -> block stays resident in VMEM
    in_specs += [pl.BlockSpec(a.shape, lambda i: (0, 0)) for a in weights]

    out_shape = (
        jax.ShapeDtypeStruct((Bp, Dp), jnp.float32),
        jax.ShapeDtypeStruct((Bp, Lp), jnp.float32),
        jax.ShapeDtypeStruct((Bp, Cp), jnp.float32),
    )
    out_specs = (
        pl.BlockSpec((tb, Dp), lambda i: (i, 0)),
        pl.BlockSpec((tb, Lp), lambda i: (i, 0)),
        pl.BlockSpec((tb, Cp), lambda i: (i, 0)),
    )

    xr_p, z_p, y_p = pl.pallas_call(
        functools.partial(aae_fused_kernel, lp=Lp),
        out_shape=out_shape,
        grid=grid,
        in_specs=in_specs,
        out_specs=out_specs,
        compiler_params=pltpu.CompilerParams(
            dimension_semantics=("parallel",),
            vmem_limit_bytes=_VMEM_LIMIT),
    )(x_p, *weights)

    return _crop(xr_p, B, Dout), _crop(z_p, B, L), _crop(y_p, B, C)


# ----------------------------------------------------------------------------
# Pure-JAX f32 reference (un-folded, un-padded) for verification.
# ----------------------------------------------------------------------------
def ref_forward(x, params):
    (w_ein, b_ein, g_e, be_e, rm_e, rv_e,
     w_z, b_z, w_y, b_y, w_yp, b_yp,
     w_din, b_din, g_d, be_d, rm_d, rv_d,
     w_dout, b_dout) = params

    h = jnp.maximum(x @ w_ein + b_ein, 0.0)
    h = (h - rm_e) / jnp.sqrt(rv_e + _EPS) * g_e + be_e
    z = h @ w_z + b_z
    _y = jax.nn.softmax(h @ w_y + b_y, axis=-1)
    y_ = jax.nn.softmax(_y @ w_yp + b_yp, axis=-1)
    cat = jnp.concatenate([z, _y], axis=1)
    hd = jnp.maximum(cat @ w_din + b_din, 0.0)
    hd = (hd - rm_d) / jnp.sqrt(rv_d + _EPS) * g_d + be_d
    xr = jnp.maximum(hd @ w_dout + b_dout, 0.0)
    return xr, z, y_


if __name__ == "__main__":
    # Small shapes consistent with the module defaults (n_layers=0):
    #   batch=64, input_dim=32, hidden_dim=32, latent_dim=8, n_classes=4,
    #   decoder latent = latent_dim + latent_dim (cat(z,_y)), output_dim=32.
    B, Din, H, L, C, Dout = 64, 32, 32, 8, 4, 32

    key = jax.random.PRNGKey(0)
    ks = jax.random.split(key, 21)

    def rnd(k, shape, scale=0.1):
        return scale * jax.random.normal(k, shape, dtype=jnp.float32)

    params = (
        # encoder input block: Linear + BatchNorm(gamma, beta, run_mean, run_var)
        rnd(ks[0], (Din, H)), rnd(ks[1], (H,)),
        1.0 + rnd(ks[2], (H,)), rnd(ks[3], (H,)),
        rnd(ks[4], (H,)), 1.0 + jnp.abs(rnd(ks[5], (H,))),
        # z_block
        rnd(ks[6], (H, L)), rnd(ks[7], (L,)),
        # y_block (outputs latent_dim per module spec)
        rnd(ks[8], (H, L)), rnd(ks[9], (L,)),
        # y_predictor
        rnd(ks[10], (L, C)), rnd(ks[11], (C,)),
        # decoder input block (Linear takes cat(z,_y) of width L + L)
        rnd(ks[12], (2 * L, H)), rnd(ks[13], (H,)),
        1.0 + rnd(ks[14], (H,)), rnd(ks[15], (H,)),
        rnd(ks[16], (H,)), 1.0 + jnp.abs(rnd(ks[17], (H,))),
        # decoder output block
        rnd(ks[18], (H, Dout)), rnd(ks[19], (Dout,)),
    )

    x = jax.random.normal(ks[20], (B, Din), dtype=jnp.float32)

    x_rec, z, y_ = semi_sup_aae_forward(x, params)
    jax.block_until_ready((x_rec, z, y_))

    xr_ref, z_ref, y_ref = ref_forward(x, params)
    # tolerance covers bf16 matmul inputs (f32 accumulation) vs the f32 reference
    assert np.allclose(np.asarray(x_rec), np.asarray(xr_ref), atol=2e-2, rtol=2e-2)
    assert np.allclose(np.asarray(z), np.asarray(z_ref), atol=2e-2, rtol=2e-2)
    assert np.allclose(np.asarray(y_), np.asarray(y_ref), atol=2e-2, rtol=2e-2)

    print("KERNEL_OK")
</pallas_src>

<mosaic_0001>
module attributes {stable_mosaic.version = 11 : i64} {
  func.func @aae_fused_kernel(%arg0: i32, %arg1: memref<32x32xf32, #tpu.memory_space<vmem>>, %arg2: memref<32x32xbf16, #tpu.memory_space<vmem>>, %arg3: memref<1x32xf32, #tpu.memory_space<vmem>>, %arg4: memref<32x256xbf16, #tpu.memory_space<vmem>>, %arg5: memref<1x256xf32, #tpu.memory_space<vmem>>, %arg6: memref<128x128xbf16, #tpu.memory_space<vmem>>, %arg7: memref<1x128xf32, #tpu.memory_space<vmem>>, %arg8: memref<256x32xbf16, #tpu.memory_space<vmem>>, %arg9: memref<1x32xf32, #tpu.memory_space<vmem>>, %arg10: memref<32x128xbf16, #tpu.memory_space<vmem>>, %arg11: memref<1x128xf32, #tpu.memory_space<vmem>>, %arg12: memref<32x128xf32, #tpu.memory_space<vmem>>, %arg13: memref<32x128xf32, #tpu.memory_space<vmem>>, %arg14: memref<32x128xf32, #tpu.memory_space<vmem>>) attributes {dimension_semantics = [#tpu.dimension_semantics<parallel>], iteration_bounds = array<i64: 2>, scalar_prefetch = 0 : i64, scratch_operands = 0 : i64, tpu.core_type = #tpu.core_type<tc>, window_params = [{transform_indices = @transform_0, window_bounds = array<i64: 32, 32>}, {pipeline_mode = #tpu.pipeline_mode<synchronous>, transform_indices = @transform_1, window_bounds = array<i64: 32, 32>}, {pipeline_mode = #tpu.pipeline_mode<synchronous>, transform_indices = @transform_2, window_bounds = array<i64: 1, 32>}, {pipeline_mode = #tpu.pipeline_mode<synchronous>, transform_indices = @transform_3, window_bounds = array<i64: 32, 256>}, {pipeline_mode = #tpu.pipeline_mode<synchronous>, transform_indices = @transform_4, window_bounds = array<i64: 1, 256>}, {pipeline_mode = #tpu.pipeline_mode<synchronous>, transform_indices = @transform_5, window_bounds = array<i64: 128, 128>}, {pipeline_mode = #tpu.pipeline_mode<synchronous>, transform_indices = @transform_6, window_bounds = array<i64: 1, 128>}, {pipeline_mode = #tpu.pipeline_mode<synchronous>, transform_indices = @transform_7, window_bounds = array<i64: 256, 32>}, {pipeline_mode = #tpu.pipeline_mode<synchronous>, transform_indices = @transform_8, window_bounds = array<i64: 1, 32>}, {pipeline_mode = #tpu.pipeline_mode<synchronous>, transform_indices = @transform_9, window_bounds = array<i64: 32, 128>}, {pipeline_mode = #tpu.pipeline_mode<synchronous>, transform_indices = @transform_10, window_bounds = array<i64: 1, 128>}, {transform_indices = @transform_11, window_bounds = array<i64: 32, 128>}, {transform_indices = @transform_12, window_bounds = array<i64: 32, 128>}, {transform_indices = @transform_13, window_bounds = array<i64: 32, 128>}]} {
    %c0 = arith.constant 0 : index
    %c0_0 = arith.constant 0 : index
    %0 = vector.load %arg1[%c0, %c0_0] : memref<32x32xf32, #tpu.memory_space<vmem>>, vector<32x32xf32>
    %1 = arith.truncf %0 : vector<32x32xf32> to vector<32x32xbf16>
    %c0_1 = arith.constant 0 : index
    %c0_2 = arith.constant 0 : index
    %2 = vector.load %arg2[%c0_1, %c0_2] : memref<32x32xbf16, #tpu.memory_space<vmem>>, vector<32x32xbf16>
    %cst = arith.constant dense<0.000000e+00> : vector<32x32xf32>
    %3 = tpu.matmul %1, %2, %cst {dimension_numbers = #tpu.dot_dimension_numbers<[1], [0], [0], [1], [0, 0, 1, 1], [], []>} : vector<32x32xbf16>, vector<32x32xbf16>, vector<32x32xf32> -> vector<32x32xf32>
    %c0_3 = arith.constant 0 : index
    %c0_4 = arith.constant 0 : index
    %4 = vector.load %arg3[%c0_3, %c0_4] : memref<1x32xf32, #tpu.memory_space<vmem>>, vector<1x32xf32>
    %5 = vector.broadcast %4 : vector<1x32xf32> to vector<32x32xf32>
    %6 = arith.addf %3, %5 : vector<32x32xf32>
    %cst_5 = arith.constant 0.000000e+00 : f32
    %7 = vector.broadcast %cst_5 : f32 to vector<32x32xf32>
    %8 = arith.maximumf %6, %7 : vector<32x32xf32>
    %9 = arith.truncf %8 : vector<32x32xf32> to vector<32x32xbf16>
    %c0_6 = arith.constant 0 : index
    %c0_7 = arith.constant 0 : index
    %10 = vector.load %arg4[%c0_6, %c0_7] : memref<32x256xbf16, #tpu.memory_space<vmem>>, vector<32x256xbf16>
    %cst_8 = arith.constant dense<0.000000e+00> : vector<32x256xf32>
    %11 = tpu.matmul %9, %10, %cst_8 {dimension_numbers = #tpu.dot_dimension_numbers<[1], [0], [0], [1], [0, 0, 1, 1], [], []>} : vector<32x32xbf16>, vector<32x256xbf16>, vector<32x256xf32> -> vector<32x256xf32>
    %c0_9 = arith.constant 0 : index
    %c0_10 = arith.constant 0 : index
    %12 = vector.load %arg5[%c0_9, %c0_10] : memref<1x256xf32, #tpu.memory_space<vmem>>, vector<1x256xf32>
    %13 = vector.broadcast %12 : vector<1x256xf32> to vector<32x256xf32>
    %14 = arith.addf %11, %13 : vector<32x256xf32>
    %15 = vector.extract_strided_slice %14 {offsets = [0, 0], sizes = [32, 128], strides = [1, 1]} : vector<32x256xf32> to vector<32x128xf32>
    %16 = vector.extract_strided_slice %14 {offsets = [0, 128], sizes = [32, 128], strides = [1, 1]} : vector<32x256xf32> to vector<32x128xf32>
    %cst_11 = arith.constant dense<0xFF800000> : vector<32xf32>
    %17 = vector.multi_reduction <maximumf>, %16, %cst_11 [1] : vector<32x128xf32> to vector<32xf32>
    %18 = vector.shape_cast %17 : vector<32xf32> to vector<32x1xf32>
    %19 = vector.broadcast %18 : vector<32x1xf32> to vector<32x128xf32>
    %20 = arith.subf %16, %19 : vector<32x128xf32>
    %21 = math.exp %20 : vector<32x128xf32>
    %cst_12 = arith.constant dense<0.000000e+00> : vector<32xf32>
    %22 = vector.multi_reduction <add>, %21, %cst_12 [1] : vector<32x128xf32> to vector<32xf32>
    %23 = vector.shape_cast %22 : vector<32xf32> to vector<32x1xf32>
    %24 = tpu.reciprocal %23 {approx = true} : vector<32x1xf32> -> vector<32x1xf32>
    %25 = arith.mulf %23, %24 : vector<32x1xf32>
    %cst_13 = arith.constant 2.000000e+00 : f32
    %26 = vector.broadcast %cst_13 : f32 to vector<32x1xf32>
    %27 = arith.subf %26, %25 : vector<32x1xf32>
    %28 = arith.mulf %24, %27 : vector<32x1xf32>
    %29 = vector.broadcast %28 : vector<32x1xf32> to vector<32x128xf32>
    %30 = arith.mulf %21, %29 : vector<32x128xf32>
    %31 = arith.truncf %30 : vector<32x128xf32> to vector<32x128xbf16>
    %c0_14 = arith.constant 0 : index
    %c0_15 = arith.constant 0 : index
    %32 = vector.load %arg6[%c0_14, %c0_15] : memref<128x128xbf16, #tpu.memory_space<vmem>>, vector<128x128xbf16>
    %cst_16 = arith.constant dense<0.000000e+00> : vector<32x128xf32>
    %33 = tpu.matmul %31, %32, %cst_16 {dimension_numbers = #tpu.dot_dimension_numbers<[1], [0], [0], [1], [0, 0, 1, 1], [], []>} : vector<32x128xbf16>, vector<128x128xbf16>, vector<32x128xf32> -> vector<32x128xf32>
    %c0_17 = arith.constant 0 : index
    %c0_18 = arith.constant 0 : index
    %34 = vector.load %arg7[%c0_17, %c0_18] : memref<1x128xf32, #tpu.memory_space<vmem>>, vector<1x128xf32>
    %35 = vector.broadcast %34 : vector<1x128xf32> to vector<32x128xf32>
    %36 = arith.addf %33, %35 : vector<32x128xf32>
    %cst_19 = arith.constant dense<0xFF800000> : vector<32xf32>
    %37 = vector.multi_reduction <maximumf>, %36, %cst_19 [1] : vector<32x128xf32> to vector<32xf32>
    %38 = vector.shape_cast %37 : vector<32xf32> to vector<32x1xf32>
    %39 = vector.broadcast %38 : vector<32x1xf32> to vector<32x128xf32>
    %40 = arith.subf %36, %39 : vector<32x128xf32>
    %41 = math.exp %40 : vector<32x128xf32>
    %cst_20 = arith.constant dense<0.000000e+00> : vector<32xf32>
    %42 = vector.multi_reduction <add>, %41, %cst_20 [1] : vector<32x128xf32> to vector<32xf32>
    %43 = vector.shape_cast %42 : vector<32xf32> to vector<32x1xf32>
    %44 = tpu.reciprocal %43 {approx = true} : vector<32x1xf32> -> vector<32x1xf32>
    %45 = arith.mulf %43, %44 : vector<32x1xf32>
    %cst_21 = arith.constant 2.000000e+00 : f32
    %46 = vector.broadcast %cst_21 : f32 to vector<32x1xf32>
    %47 = arith.subf %46, %45 : vector<32x1xf32>
    %48 = arith.mulf %44, %47 : vector<32x1xf32>
    %49 = vector.broadcast %48 : vector<32x1xf32> to vector<32x128xf32>
    %50 = arith.mulf %41, %49 : vector<32x128xf32>
    %51 = tpu.concatenate %15, %30 in 1 : vector<32x128xf32>, vector<32x128xf32> -> vector<32x256xf32>
    %52 = arith.truncf %51 : vector<32x256xf32> to vector<32x256xbf16>
    %c0_22 = arith.constant 0 : index
    %c0_23 = arith.constant 0 : index
    %53 = vector.load %arg8[%c0_22, %c0_23] : memref<256x32xbf16, #tpu.memory_space<vmem>>, vector<256x32xbf16>
    %cst_24 = arith.constant dense<0.000000e+00> : vector<32x32xf32>
    %54 = tpu.matmul %52, %53, %cst_24 {dimension_numbers = #tpu.dot_dimension_numbers<[1], [0], [0], [1], [0, 0, 1, 1], [], []>} : vector<32x256xbf16>, vector<256x32xbf16>, vector<32x32xf32> -> vector<32x32xf32>
    %c0_25 = arith.constant 0 : index
    %c0_26 = arith.constant 0 : index
    %55 = vector.load %arg9[%c0_25, %c0_26] : memref<1x32xf32, #tpu.memory_space<vmem>>, vector<1x32xf32>
    %56 = vector.broadcast %55 : vector<1x32xf32> to vector<32x32xf32>
    %57 = arith.addf %54, %56 : vector<32x32xf32>
    %cst_27 = arith.constant 0.000000e+00 : f32
    %58 = vector.broadcast %cst_27 : f32 to vector<32x32xf32>
    %59 = arith.maximumf %57, %58 : vector<32x32xf32>
    %60 = arith.truncf %59 : vector<32x32xf32> to vector<32x32xbf16>
    %c0_28 = arith.constant 0 : index
    %c0_29 = arith.constant 0 : index
    %61 = vector.load %arg10[%c0_28, %c0_29] : memref<32x128xbf16, #tpu.memory_space<vmem>>, vector<32x128xbf16>
    %cst_30 = arith.constant dense<0.000000e+00> : vector<32x128xf32>
    %62 = tpu.matmul %60, %61, %cst_30 {dimension_numbers = #tpu.dot_dimension_numbers<[1], [0], [0], [1], [0, 0, 1, 1], [], []>} : vector<32x32xbf16>, vector<32x128xbf16>, vector<32x128xf32> -> vector<32x128xf32>
    %c0_31 = arith.constant 0 : index
    %c0_32 = arith.constant 0 : index
    %63 = vector.load %arg11[%c0_31, %c0_32] : memref<1x128xf32, #tpu.memory_space<vmem>>, vector<1x128xf32>
    %64 = vector.broadcast %63 : vector<1x128xf32> to vector<32x128xf32>
    %65 = arith.addf %62, %64 : vector<32x128xf32>
    %cst_33 = arith.constant 0.000000e+00 : f32
    %66 = vector.broadcast %cst_33 : f32 to vector<32x128xf32>
    %67 = arith.maximumf %65, %66 : vector<32x128xf32>
    %c0_34 = arith.constant 0 : index
    %c0_35 = arith.constant 0 : index
    %68 = vector.load %arg12[%c0_34, %c0_35] : memref<32x128xf32, #tpu.memory_space<vmem>>, vector<32x128xf32>
    tpu.vector_store %arg12[%c0_34, %c0_35], %67 {strides = array<i32>} : memref<32x128xf32, #tpu.memory_space<vmem>>, vector<32x128xf32>,
    %c0_36 = arith.constant 0 : index
    %c0_37 = arith.constant 0 : index
    %69 = vector.load %arg13[%c0_36, %c0_37] : memref<32x128xf32, #tpu.memory_space<vmem>>, vector<32x128xf32>
    tpu.vector_store %arg13[%c0_36, %c0_37], %15 {strides = array<i32>} : memref<32x128xf32, #tpu.memory_space<vmem>>, vector<32x128xf32>,
    %c0_38 = arith.constant 0 : index
    %c0_39 = arith.constant 0 : index
    %70 = vector.load %arg14[%c0_38, %c0_39] : memref<32x128xf32, #tpu.memory_space<vmem>>, vector<32x128xf32>
    tpu.vector_store %arg14[%c0_38, %c0_39], %50 {strides = array<i32>} : memref<32x128xf32, #tpu.memory_space<vmem>>, vector<32x128xf32>,
    return
  }
  func.func @transform_0(%arg0: i32) -> (i32, i32) {
    %c0_i32 = arith.constant 0 : i32
    %c0_i32_0 = arith.constant 0 : i32
    return %arg0, %c0_i32 : i32, i32
  }
  func.func @transform_1(%arg0: i32) -> (i32, i32) {
    %c0_i32 = arith.constant 0 : i32
    %c0_i32_0 = arith.constant 0 : i32
    %c0_i32_1 = arith.constant 0 : i32
    return %c0_i32, %c0_i32_0 : i32, i32
  }
  func.func @transform_2(%arg0: i32) -> (i32, i32) {
    %c0_i32 = arith.constant 0 : i32
    %c0_i32_0 = arith.constant 0 : i32
    %c0_i32_1 = arith.constant 0 : i32
    return %c0_i32, %c0_i32_0 : i32, i32
  }
  func.func @transform_3(%arg0: i32) -> (i32, i32) {
    %c0_i32 = arith.constant 0 : i32
    %c0_i32_0 = arith.constant 0 : i32
    %c0_i32_1 = arith.constant 0 : i32
    return %c0_i32, %c0_i32_0 : i32, i32
  }
  func.func @transform_4(%arg0: i32) -> (i32, i32) {
    %c0_i32 = arith.constant 0 : i32
    %c0_i32_0 = arith.constant 0 : i32
    %c0_i32_1 = arith.constant 0 : i32
    return %c0_i32, %c0_i32_0 : i32, i32
  }
  func.func @transform_5(%arg0: i32) -> (i32, i32) {
    %c0_i32 = arith.constant 0 : i32
    %c0_i32_0 = arith.constant 0 : i32
    %c0_i32_1 = arith.constant 0 : i32
    return %c0_i32, %c0_i32_0 : i32, i32
  }
  func.func @transform_6(%arg0: i32) -> (i32, i32) {
    %c0_i32 = arith.constant 0 : i32
    %c0_i32_0 = arith.constant 0 : i32
    %c0_i32_1 = arith.constant 0 : i32
    return %c0_i32, %c0_i32_0 : i32, i32
  }
  func.func @transform_7(%arg0: i32) -> (i32, i32) {
    %c0_i32 = arith.constant 0 : i32
    %c0_i32_0 = arith.constant 0 : i32
    %c0_i32_1 = arith.constant 0 : i32
    return %c0_i32, %c0_i32_0 : i32, i32
  }
  func.func @transform_8(%arg0: i32) -> (i32, i32) {
    %c0_i32 = arith.constant 0 : i32
    %c0_i32_0 = arith.constant 0 : i32
    %c0_i32_1 = arith.constant 0 : i32
    return %c0_i32, %c0_i32_0 : i32, i32
  }
  func.func @transform_9(%arg0: i32) -> (i32, i32) {
    %c0_i32 = arith.constant 0 : i32
    %c0_i32_0 = arith.constant 0 : i32
    %c0_i32_1 = arith.constant 0 : i32
    return %c0_i32, %c0_i32_0 : i32, i32
  }
  func.func @transform_10(%arg0: i32) -> (i32, i32) {
    %c0_i32 = arith.constant 0 : i32
    %c0_i32_0 = arith.constant 0 : i32
    %c0_i32_1 = arith.constant 0 : i32
    return %c0_i32, %c0_i32_0 : i32, i32
  }
  func.func @transform_11(%arg0: i32) -> (i32, i32) {
    %c0_i32 = arith.constant 0 : i32
    %c0_i32_0 = arith.constant 0 : i32
    return %arg0, %c0_i32 : i32, i32
  }
  func.func @transform_12(%arg0: i32) -> (i32, i32) {
    %c0_i32 = arith.constant 0 : i32
    %c0_i32_0 = arith.constant 0 : i32
    return %arg0, %c0_i32 : i32, i32
  }
  func.func @transform_13(%arg0: i32) -> (i32, i32) {
    %c0_i32 = arith.constant 0 : i32
    %c0_i32_0 = arith.constant 0 : i32
    return %arg0, %c0_i32 : i32, i32
  }
}

</mosaic_0001>

<llo_original>
// kernel: tpu_custom_call.1
$region0: #{tpu_custom_call.1}
  #allocation0 [shape = 'u32[]', space=smem, size = 0x4, offset = 0x4, fixed_abs, tag = 'smem constant byte address 0x4 - core index']
  #allocation1 [shape = 'u32[144,128]{1,0:T(1,128)}', space=vmem, size = 0x12000, scoped, tag = 'internal scratch']
  %s0 = inlined_call_operand.vmem [shape: f32[64,32], index: 0, kind: input, shape index: {}]
  %s1 = inlined_call_operand.vmem [shape: bf16[32,32], index: 1, kind: input, shape index: {}]
  %s2 = inlined_call_operand.vmem [shape: f32[1,32], index: 2, kind: input, shape index: {}]
  %s3 = inlined_call_operand.vmem [shape: bf16[32,256], index: 3, kind: input, shape index: {}]
  %s4 = inlined_call_operand.vmem [shape: f32[1,256], index: 4, kind: input, shape index: {}]
  %s5 = inlined_call_operand.vmem [shape: bf16[128,128], index: 5, kind: input, shape index: {}]
  %s6 = inlined_call_operand.vmem [shape: f32[1,128], index: 6, kind: input, shape index: {}]
  %s7 = inlined_call_operand.vmem [shape: bf16[256,32], index: 7, kind: input, shape index: {}]
  %s8 = inlined_call_operand.vmem [shape: f32[1,32], index: 8, kind: input, shape index: {}]
  %s9 = inlined_call_operand.vmem [shape: bf16[32,128], index: 9, kind: input, shape index: {}]
  %s10 = inlined_call_operand.vmem [shape: f32[1,128], index: 10, kind: input, shape index: {}]
  %s11 = inlined_call_operand.hbm [shape: f32[64,128], index: 11, kind: output, shape index: {0}]
  %s12 = inlined_call_operand.hbm [shape: f32[64,128], index: 12, kind: output, shape index: {1}]
  %s13 = inlined_call_operand.hbm [shape: f32[64,128], index: 13, kind: output, shape index: {2}]
  %14 = xla_tuple %s11, %s12, %s13
  %s15 = sld [smem:[#allocation0]]
  $region93: #{tpu_custom_call.1} parent=0
    _
  %s17 = ssub.s32 1, %s15
  %s18 = scalar_select 0, %s17, %s15
  $region1: #{tpu_custom_call.1} parent=0
    #allocation2 [shape = 'u8[32768]{0}', space=vmem, size = 0x8000, scoped, tag = 'output window, operand 0']
    #allocation3 [shape = 's32[2]{0}', space=sflag, size = 0x8, scoped, tag = 'scoped memory for tpu_custom_call.1']
    #allocation4 [shape = 'u8[32768]{0}', space=vmem, size = 0x8000, scoped, tag = 'output window, operand 1']
    #allocation5 [shape = 's32[2]{0}', space=sflag, size = 0x8, scoped, tag = 'scoped memory for tpu_custom_call.1']
    #allocation6 [shape = 'u8[32768]{0}', space=vmem, size = 0x8000, scoped, tag = 'output window, operand 2']
    %19 = vsyncpa [#allocation3], 0
    %s20 = scalar_lea.sflag [#allocation3], 1
    %21 = vsyncpa %s20, 0
    %22 = vsyncpa [#allocation5], 0
    %s23 = scalar_lea.sflag [#allocation5], 1
    %24 = vsyncpa %s23, 0
    loop: start=0, step=1, limit=4
    $region2: #{tpu_custom_call.1} parent=1 // loop_pre_header
      _
    $region3: #{tpu_custom_call.1} parent=1 // loop_header
      %s26 = sphi 0, %s30
      %p27 = scmp.ge.s32.totalorder %s26, 4
      %s36 = sphi 0, %s38
      %s39 = sphi 0, %s36
      %s40 = sphi 0, %s39
      %s56 = sphi 0, %s40
      %s60 = sphi 0, %s60
      %s62 = sphi 0, %s60
      %s63 = sphi 0, %s62
      %s77 = sphi 0, %s63
      %s81 = sphi 0, %s81
      %s83 = sphi 0, %s81
      %s84 = sphi 0, %s83
      %s98 = sphi 0, %s84
      %s102 = sphi 0, %s102
      %s104 = sphi 0, %s102
      %s105 = sphi 0, %s104
      %s119 = sphi 0, %s105
      %s123 = sphi 0, %s123
      %s125 = sphi 0, %s123
      %s126 = sphi 0, %s125
      %s140 = sphi 0, %s126
      %s144 = sphi 0, %s144
      %s146 = sphi 0, %s144
      %s147 = sphi 0, %s146
      %s161 = sphi 0, %s147
      %s165 = sphi 0, %s165
      %s167 = sphi 0, %s165
      %s168 = sphi 0, %s167
      %s182 = sphi 0, %s168
      %s186 = sphi 0, %s186
      %s188 = sphi 0, %s186
      %s189 = sphi 0, %s188
      %s203 = sphi 0, %s189
      %s207 = sphi 0, %s207
      %s209 = sphi 0, %s207
      %s210 = sphi 0, %s209
      %s224 = sphi 0, %s210
      %s228 = sphi 0, %s228
      %s230 = sphi 0, %s228
      %s231 = sphi 0, %s230
      %s245 = sphi 0, %s231
      %s249 = sphi 0, %s249
      %s251 = sphi 0, %s249
      %s252 = sphi 0, %s251
      %s266 = sphi 0, %s252
      %s272 = sphi 0, %s274
      %s275 = sphi 0, %s272
      %s276 = sphi 0, %s275
      %s292 = sphi 0, %s276
      %s298 = sphi 0, %s300
      %s301 = sphi 0, %s298
      %s302 = sphi 0, %s301
      %s318 = sphi 0, %s302
      %s324 = sphi 0, %s326
      %s327 = sphi 0, %s324
      %s328 = sphi 0, %s327
      %s344 = sphi 0, %s328
    $region4: #{tpu_custom_call.1} parent=1 // loop_header_branch
      %29 = sbr.rel (%p27) target = $region8
    $region5: #{tpu_custom_call.1} parent=1 // loop_body
      %s31 = ssub.s32 %s26, 1
      %s32 = ssub.s32 %s26, 2
      %s33 = sadd.s32 %s26, 1
      %s34 = ssub.s32 %s26, %s33
      %p35 = scmp.eq.s32.totalorder %s34, 0
      %s37 = sadd.s32 %s36, 1
      %s38 = scalar_select %p35, %s36, %s37
      %p41 = pneg %p35
      %p42 = scmp.eq.s32.totalorder %s26, 1
      %p43 = por %p41, %p42
      %p44 = scmp.ne.s32.totalorder %s36, %s39
      %p45 = scmp.eq.s32.totalorder %s26, 0
      %p46 = por %p44, %p45
      %p47 = scmp.ne.s32.totalorder %s36, %s39
      %p48 = scmp.eq.s32.totalorder %s31, 1
      %p49 = por %p47, %p48
      %p50 = scmp.ne.s32.totalorder %s39, %s40
      %p51 = scmp.eq.s32.totalorder %s31, 0
      %p52 = por %p50, %p51
      %p53 = scmp.ne.s32.totalorder %s39, %s40
      %p54 = scmp.eq.s32.totalorder %s32, 1
      %p55 = por %p53, %p54
      %p57 = scmp.ne.s32.totalorder %s40, %s56
      %p58 = scmp.eq.s32.totalorder %s32, 0
      %p59 = por %p57, %p58
      %s61 = sadd.s32 %s60, 1
      %p64 = scmp.eq.s32.totalorder %s26, 1
      %p65 = scmp.ne.s32.totalorder %s60, %s62
      %p66 = scmp.eq.s32.totalorder %s26, 0
      %p67 = por %p65, %p66
      %p68 = scmp.ne.s32.totalorder %s60, %s62
      %p69 = scmp.eq.s32.totalorder %s31, 1
      %p70 = por %p68, %p69
      %p71 = scmp.ne.s32.totalorder %s62, %s63
      %p72 = scmp.eq.s32.totalorder %s31, 0
      %p73 = por %p71, %p72
      %p74 = scmp.ne.s32.totalorder %s62, %s63
      %p75 = scmp.eq.s32.totalorder %s32, 1
      %p76 = por %p74, %p75
      %p78 = scmp.ne.s32.totalorder %s63, %s77
      %p79 = scmp.eq.s32.totalorder %s32, 0
      %p80 = por %p78, %p79
      %s82 = sadd.s32 %s81, 1
      %p85 = scmp.eq.s32.totalorder %s26, 1
      %p86 = scmp.ne.s32.totalorder %s81, %s83
      %p87 = scmp.eq.s32.totalorder %s26, 0
      %p88 = por %p86, %p87
      %p89 = scmp.ne.s32.totalorder %s81, %s83
      %p90 = scmp.eq.s32.totalorder %s31, 1
      %p91 = por %p89, %p90
      %p92 = scmp.ne.s32.totalorder %s83, %s84
      %p93 = scmp.eq.s32.totalorder %s31, 0
      %p94 = por %p92, %p93
      %p95 = scmp.ne.s32.totalorder %s83, %s84
      %p96 = scmp.eq.s32.totalorder %s32, 1
      %p97 = por %p95, %p96
      %p99 = scmp.ne.s32.totalorder %s84, %s98
      %p100 = scmp.eq.s32.totalorder %s32, 0
      %p101 = por %p99, %p100
      %s103 = sadd.s32 %s102, 1
      %p106 = scmp.eq.s32.totalorder %s26, 1
      %p107 = scmp.ne.s32.totalorder %s102, %s104
      %p108 = scmp.eq.s32.totalorder %s26, 0
      %p109 = por %p107, %p108
      %p110 = scmp.ne.s32.totalorder %s102, %s104
      %p111 = scmp.eq.s32.totalorder %s31, 1
      %p112 = por %p110, %p111
      %p113 = scmp.ne.s32.totalorder %s104, %s105
      %p114 = scmp.eq.s32.totalorder %s31, 0
      %p115 = por %p113, %p114
      %p116 = scmp.ne.s32.totalorder %s104, %s105
      %p117 = scmp.eq.s32.totalorder %s32, 1
      %p118 = por %p116, %p117
      %p120 = scmp.ne.s32.totalorder %s105, %s119
      %p121 = scmp.eq.s32.totalorder %s32, 0
      %p122 = por %p120, %p121
      %s124 = sadd.s32 %s123, 1
      %p127 = scmp.eq.s32.totalorder %s26, 1
      %p128 = scmp.ne.s32.totalorder %s123, %s125
      %p129 = scmp.eq.s32.totalorder %s26, 0
      %p130 = por %p128, %p129
      %p131 = scmp.ne.s32.totalorder %s123, %s125
      %p132 = scmp.eq.s32.totalorder %s31, 1
      %p133 = por %p131, %p132
      %p134 = scmp.ne.s32.totalorder %s125, %s126
      %p135 = scmp.eq.s32.totalorder %s31, 0
      %p136 = por %p134, %p135
      %p137 = scmp.ne.s32.totalorder %s125, %s126
      %p138 = scmp.eq.s32.totalorder %s32, 1
      %p139 = por %p137, %p138
      %p141 = scmp.ne.s32.totalorder %s126, %s140
      %p142 = scmp.eq.s32.totalorder %s32, 0
      %p143 = por %p141, %p142
      %s145 = sadd.s32 %s144, 1
      %p148 = scmp.eq.s32.totalorder %s26, 1
      %p149 = scmp.ne.s32.totalorder %s144, %s146
      %p150 = scmp.eq.s32.totalorder %s26, 0
      %p151 = por %p149, %p150
      %p152 = scmp.ne.s32.totalorder %s144, %s146
      %p153 = scmp.eq.s32.totalorder %s31, 1
      %p154 = por %p152, %p153
      %p155 = scmp.ne.s32.totalorder %s146, %s147
      %p156 = scmp.eq.s32.totalorder %s31, 0
      %p157 = por %p155, %p156
      %p158 = scmp.ne.s32.totalorder %s146, %s147
      %p159 = scmp.eq.s32.totalorder %s32, 1
      %p160 = por %p158, %p159
      %p162 = scmp.ne.s32.totalorder %s147, %s161
      %p163 = scmp.eq.s32.totalorder %s32, 0
      %p164 = por %p162, %p163
      %s166 = sadd.s32 %s165, 1
      %p169 = scmp.eq.s32.totalorder %s26, 1
      %p170 = scmp.ne.s32.totalorder %s165, %s167
      %p171 = scmp.eq.s32.totalorder %s26, 0
      %p172 = por %p170, %p171
      %p173 = scmp.ne.s32.totalorder %s165, %s167
      %p174 = scmp.eq.s32.totalorder %s31, 1
      %p175 = por %p173, %p174
      %p176 = scmp.ne.s32.totalorder %s167, %s168
      %p177 = scmp.eq.s32.totalorder %s31, 0
      %p178 = por %p176, %p177
      %p179 = scmp.ne.s32.totalorder %s167, %s168
      %p180 = scmp.eq.s32.totalorder %s32, 1
      %p181 = por %p179, %p180
      %p183 = scmp.ne.s32.totalorder %s168, %s182
      %p184 = scmp.eq.s32.totalorder %s32, 0
      %p185 = por %p183, %p184
      %s187 = sadd.s32 %s186, 1
      %p190 = scmp.eq.s32.totalorder %s26, 1
      %p191 = scmp.ne.s32.totalorder %s186, %s188
      %p192 = scmp.eq.s32.totalorder %s26, 0
      %p193 = por %p191, %p192
      %p194 = scmp.ne.s32.totalorder %s186, %s188
      %p195 = scmp.eq.s32.totalorder %s31, 1
      %p196 = por %p194, %p195
      %p197 = scmp.ne.s32.totalorder %s188, %s189
      %p198 = scmp.eq.s32.totalorder %s31, 0
      %p199 = por %p197, %p198
      %p200 = scmp.ne.s32.totalorder %s188, %s189
      %p201 = scmp.eq.s32.totalorder %s32, 1
      %p202 = por %p200, %p201
      %p204 = scmp.ne.s32.totalorder %s189, %s203
      %p205 = scmp.eq.s32.totalorder %s32, 0
      %p206 = por %p204, %p205
      %s208 = sadd.s32 %s207, 1
      %p211 = scmp.eq.s32.totalorder %s26, 1
      %p212 = scmp.ne.s32.totalorder %s207, %s209
      %p213 = scmp.eq.s32.totalorder %s26, 0
      %p214 = por %p212, %p213
      %p215 = scmp.ne.s32.totalorder %s207, %s209
      %p216 = scmp.eq.s32.totalorder %s31, 1
      %p217 = por %p215, %p216
      %p218 = scmp.ne.s32.totalorder %s209, %s210
      %p219 = scmp.eq.s32.totalorder %s31, 0
      %p220 = por %p218, %p219
      %p221 = scmp.ne.s32.totalorder %s209, %s210
      %p222 = scmp.eq.s32.totalorder %s32, 1
      %p223 = por %p221, %p222
      %p225 = scmp.ne.s32.totalorder %s210, %s224
      %p226 = scmp.eq.s32.totalorder %s32, 0
      %p227 = por %p225, %p226
      %s229 = sadd.s32 %s228, 1
      %p232 = scmp.eq.s32.totalorder %s26, 1
      %p233 = scmp.ne.s32.totalorder %s228, %s230
      %p234 = scmp.eq.s32.totalorder %s26, 0
      %p235 = por %p233, %p234
      %p236 = scmp.ne.s32.totalorder %s228, %s230
      %p237 = scmp.eq.s32.totalorder %s31, 1
      %p238 = por %p236, %p237
      %p239 = scmp.ne.s32.totalorder %s230, %s231
      %p240 = scmp.eq.s32.totalorder %s31, 0
      %p241 = por %p239, %p240
      %p242 = scmp.ne.s32.totalorder %s230, %s231
      %p243 = scmp.eq.s32.totalorder %s32, 1
      %p244 = por %p242, %p243
      %p246 = scmp.ne.s32.totalorder %s231, %s245
      %p247 = scmp.eq.s32.totalorder %s32, 0
      %p248 = por %p246, %p247
      %s250 = sadd.s32 %s249, 1
      %p253 = scmp.eq.s32.totalorder %s26, 1
      %p254 = scmp.ne.s32.totalorder %s249, %s251
      %p255 = scmp.eq.s32.totalorder %s26, 0
      %p256 = por %p254, %p255
      %p257 = scmp.ne.s32.totalorder %s249, %s251
      %p258 = scmp.eq.s32.totalorder %s31, 1
      %p259 = por %p257, %p258
      %p260 = scmp.ne.s32.totalorder %s251, %s252
      %p261 = scmp.eq.s32.totalorder %s31, 0
      %p262 = por %p260, %p261
      %p263 = scmp.ne.s32.totalorder %s251, %s252
      %p264 = scmp.eq.s32.totalorder %s32, 1
      %p265 = por %p263, %p264
      %p267 = scmp.ne.s32.totalorder %s252, %s266
      %p268 = scmp.eq.s32.totalorder %s32, 0
      %p269 = por %p267, %p268
      %s270 = ssub.s32 %s26, %s33
      %p271 = scmp.eq.s32.totalorder %s270, 0
      %s273 = sadd.s32 %s272, 1
      %s274 = scalar_select %p271, %s272, %s273
      %p277 = pneg %p271
      %p278 = scmp.eq.s32.totalorder %s26, 1
      %p279 = por %p277, %p278
      %p280 = scmp.ne.s32.totalorder %s272, %s275
      %p281 = scmp.eq.s32.totalorder %s26, 0
      %p282 = por %p280, %p281
      %p283 = scmp.ne.s32.totalorder %s272, %s275
      %p284 = scmp.eq.s32.totalorder %s31, 1
      %p285 = por %p283, %p284
      %p286 = scmp.ne.s32.totalorder %s275, %s276
      %p287 = scmp.eq.s32.totalorder %s31, 0
      %p288 = por %p286, %p287
      %p289 = scmp.ne.s32.totalorder %s275, %s276
      %p290 = scmp.eq.s32.totalorder %s32, 1
      %p291 = por %p289, %p290
      %p293 = scmp.ne.s32.totalorder %s276, %s292
      %p294 = scmp.eq.s32.totalorder %s32, 0
      %p295 = por %p293, %p294
      %s296 = ssub.s32 %s26, %s33
      %p297 = scmp.eq.s32.totalorder %s296, 0
      %s299 = sadd.s32 %s298, 1
      %s300 = scalar_select %p297, %s298, %s299
      %p303 = pneg %p297
      %p304 = scmp.eq.s32.totalorder %s26, 1
      %p305 = por %p303, %p304
      %p306 = scmp.ne.s32.totalorder %s298, %s301
      %p307 = scmp.eq.s32.totalorder %s26, 0
      %p308 = por %p306, %p307
      %p309 = scmp.ne.s32.totalorder %s298, %s301
      %p310 = scmp.eq.s32.totalorder %s31, 1
      %p311 = por %p309, %p310
      %p312 = scmp.ne.s32.totalorder %s301, %s302
      %p313 = scmp.eq.s32.totalorder %s31, 0
      %p314 = por %p312, %p313
      %p315 = scmp.ne.s32.totalorder %s301, %s302
      %p316 = scmp.eq.s32.totalorder %s32, 1
      %p317 = por %p315, %p316
      %p319 = scmp.ne.s32.totalorder %s302, %s318
      %p320 = scmp.eq.s32.totalorder %s32, 0
      %p321 = por %p319, %p320
      %s322 = ssub.s32 %s26, %s33
      %p323 = scmp.eq.s32.totalorder %s322, 0
      %s325 = sadd.s32 %s324, 1
      %s326 = scalar_select %p323, %s324, %s325
      %p329 = pneg %p323
      %p330 = scmp.eq.s32.totalorder %s26, 1
      %p331 = por %p329, %p330
      %p332 = scmp.ne.s32.totalorder %s324, %s327
      %p333 = scmp.eq.s32.totalorder %s26, 0
      %p334 = por %p332, %p333
      %p335 = scmp.ne.s32.totalorder %s324, %s327
      %p336 = scmp.eq.s32.totalorder %s31, 1
      %p337 = por %p335, %p336
      %p338 = scmp.ne.s32.totalorder %s327, %s328
      %p339 = scmp.eq.s32.totalorder %s31, 0
      %p340 = por %p338, %p339
      %p341 = scmp.ne.s32.totalorder %s327, %s328
      %p342 = scmp.eq.s32.totalorder %s32, 1
      %p343 = por %p341, %p342
      %p345 = scmp.ne.s32.totalorder %s328, %s344
      %p346 = scmp.eq.s32.totalorder %s32, 0
      %p347 = por %p345, %p346
      %p348 = scmp.le.s32.totalorder 1, %s26
      %p349 = scmp.lt.s32.totalorder %s26, 3
      %p350 = pnand %p348, %p349
      %p351 = pneg %p350
      // Predicated region
      $region9: #{tpu_custom_call.1} parent=5 // pred_check
        _
      $region10: #{tpu_custom_call.1} parent=5 // pred_check_branch
        %353 = sbr.rel (%p350) target = $region12
      $region11: #{tpu_custom_call.1} parent=5 // pred_region
        %s354 = ssub.s32 %s26, 1
        // Predicated region
        $region13: #{tpu_custom_call.1} parent=11 // pred_check
          %p355 = pneg %p73
        $region14: #{tpu_custom_call.1} parent=11 // pred_check_branch
          %357 = sbr.rel (%p355) target = $region16
        $region15: #{tpu_custom_call.1} parent=11 // pred_region
          _
        $region16: #{tpu_custom_call.1} parent=11 // pred_fallthru
          _
        // Predicated region
        $region17: #{tpu_custom_call.1} parent=11 // pred_check
          %p358 = pneg %p94
        $region18: #{tpu_custom_call.1} parent=11 // pred_check_branch
          %360 = sbr.rel (%p358) target = $region20
        $region19: #{tpu_custom_call.1} parent=11 // pred_region
          _
        $region20: #{tpu_custom_call.1} parent=11 // pred_fallthru
          _
        // Predicated region
        $region21: #{tpu_custom_call.1} parent=11 // pred_check
          %p361 = pneg %p115
        $region22: #{tpu_custom_call.1} parent=11 // pred_check_branch
          %363 = sbr.rel (%p361) target = $region24
        $region23: #{tpu_custom_call.1} parent=11 // pred_region
          _
        $region24: #{tpu_custom_call.1} parent=11 // pred_fallthru
          _
        // Predicated region
        $region25: #{tpu_custom_call.1} parent=11 // pred_check
          %p364 = pneg %p136
        $region26: #{tpu_custom_call.1} parent=11 // pred_check_branch
          %366 = sbr.rel (%p364) target = $region28
        $region27: #{tpu_custom_call.1} parent=11 // pred_region
          _
        $region28: #{tpu_custom_call.1} parent=11 // pred_fallthru
          _
        // Predicated region
        $region29: #{tpu_custom_call.1} parent=11 // pred_check
          %p367 = pneg %p157
        $region30: #{tpu_custom_call.1} parent=11 // pred_check_branch
          %369 = sbr.rel (%p367) target = $region32
        $region31: #{tpu_custom_call.1} parent=11 // pred_region
          _
        $region32: #{tpu_custom_call.1} parent=11 // pred_fallthru
          _
        // Predicated region
        $region33: #{tpu_custom_call.1} parent=11 // pred_check
          %p370 = pneg %p178
        $region34: #{tpu_custom_call.1} parent=11 // pred_check_branch
          %372 = sbr.rel (%p370) target = $region36
        $region35: #{tpu_custom_call.1} parent=11 // pred_region
          _
        $region36: #{tpu_custom_call.1} parent=11 // pred_fallthru
          _
        // Predicated region
        $region37: #{tpu_custom_call.1} parent=11 // pred_check
          %p373 = pneg %p199
        $region38: #{tpu_custom_call.1} parent=11 // pred_check_branch
          %375 = sbr.rel (%p373) target = $region40
        $region39: #{tpu_custom_call.1} parent=11 // pred_region
          _
        $region40: #{tpu_custom_call.1} parent=11 // pred_fallthru
          _
        // Predicated region
        $region41: #{tpu_custom_call.1} parent=11 // pred_check
          %p376 = pneg %p220
        $region42: #{tpu_custom_call.1} parent=11 // pred_check_branch
          %378 = sbr.rel (%p376) target = $region44
        $region43: #{tpu_custom_call.1} parent=11 // pred_region
          _
        $region44: #{tpu_custom_call.1} parent=11 // pred_fallthru
          _
        // Predicated region
        $region45: #{tpu_custom_call.1} parent=11 // pred_check
          %p379 = pneg %p241
        $region46: #{tpu_custom_call.1} parent=11 // pred_check_branch
          %381 = sbr.rel (%p379) target = $region48
        $region47: #{tpu_custom_call.1} parent=11 // pred_region
          _
        $region48: #{tpu_custom_call.1} parent=11 // pred_fallthru
          _
        // Predicated region
        $region49: #{tpu_custom_call.1} parent=11 // pred_check
          %p382 = pneg %p262
        $region50: #{tpu_custom_call.1} parent=11 // pred_check_branch
          %384 = sbr.rel (%p382) target = $region52
        $region51: #{tpu_custom_call.1} parent=11 // pred_region
          _
        $region52: #{tpu_custom_call.1} parent=11 // pred_fallthru
          _
      $region12: #{tpu_custom_call.1} parent=5 // pred_fallthru
        _
      %p385 = scmp.lt.s32.totalorder %s26, 2
      // Predicated region
      $region53: #{tpu_custom_call.1} parent=5 // pred_check
        %p386 = pneg %p385
      $region54: #{tpu_custom_call.1} parent=5 // pred_check_branch
        %388 = sbr.rel (%p386) target = $region56
      $region55: #{tpu_custom_call.1} parent=5 // pred_region
        // Predicated region
        $region57: #{tpu_custom_call.1} parent=55 // pred_check
          %p389 = pneg %p46
        $region58: #{tpu_custom_call.1} parent=55 // pred_check_branch
          %391 = sbr.rel (%p389) target = $region60
        $region59: #{tpu_custom_call.1} parent=55 // pred_region
          %s392 = smul.u32 4, %s26
          %p393 = scmp.lt.s32.totalorder %s392, 7
          %s394 = scalar_select %p393, %s392, 7
          %s395 = smul.addr %s394, 8
          %s396 = scalar_lea.vmem %s0, %s395
          %s397 = smul.u32 4, %s26
        $region60: #{tpu_custom_call.1} parent=55 // pred_fallthru
          _
      $region56: #{tpu_custom_call.1} parent=5 // pred_fallthru
        _
      %p398 = scmp.le.s32.totalorder 1, %s26
      %p399 = scmp.lt.s32.totalorder %s26, 3
      %p400 = pnand %p398, %p399
      %p401 = pneg %p400
      // Predicated region
      $region61: #{tpu_custom_call.1} parent=5 // pred_check
        _
      $region62: #{tpu_custom_call.1} parent=5 // pred_check_branch
        %403 = sbr.rel (%p400) target = $region64
      $region63: #{tpu_custom_call.1} parent=5 // pred_region
        %s404 = ssub.s32 %s26, 1
        %s405 = smul.u32 4, %s31
        %p406 = scmp.lt.s32.totalorder %s405, 7
        %s407 = scalar_select %p406, %s405, 7
        %s408 = smul.addr %s407, 8
        %s409 = scalar_lea.vmem %s0, %s408
        %p410 = pneg %p52
        %p411 = pneg %p49
        %p412 = pneg %p73
        %p413 = pneg %p70
        %p414 = pneg %p94
        %p415 = pneg %p91
        %p416 = pneg %p115
        %p417 = pneg %p112
        %p418 = pneg %p136
        %p419 = pneg %p133
        %p420 = pneg %p157
        %p421 = pneg %p154
        %p422 = pneg %p178
        %p423 = pneg %p175
        %p424 = pneg %p199
        %p425 = pneg %p196
        %p426 = pneg %p220
        %p427 = pneg %p217
        %p428 = pneg %p241
        %p429 = pneg %p238
        %p430 = pneg %p262
        %p431 = pneg %p259
        %p432 = pneg %p288
        %p433 = pneg %p285
        %s434 = sand.u32 %s275, 1
        %s435 = scalar_lea.sflag [#allocation3], %s434
        %s436 = sand.u32 %s275, 1
        %s437 = smul.addr %s436, 32
        %s438 = scalar_lea.vmem [#allocation2], %s437
        %p439 = pneg %p314
        %p440 = pneg %p311
        %s441 = sand.u32 %s31, 1
        %s442 = scalar_lea.sflag [#allocation5], %s441
        %s443 = sand.u32 %s301, 1
        %s444 = smul.addr %s443, 32
        %s445 = scalar_lea.vmem [#allocation4], %s444
        %p446 = pneg %p340
        %p447 = pneg %p337
        %s448 = sand.u32 %s31, 1
        %s449 = scalar_lea.sflag [#allocation5], %s448
        %s450 = sand.u32 %s327, 1
        %s451 = smul.addr %s450, 32
        %s452 = scalar_lea.vmem [#allocation6], %s451
        %s453 = smul.u32 4, %s31
        %p454 = scmp.lt.s32.totalorder %s453, 7
        %s455 = scalar_select %p454, %s453, 7
        %s456 = smul.addr %s455, 8
        %s457 = scalar_lea.vmem %s0, %s456
        %s458 = smul.u32 4, %s31
        %s459 = smul.u32 4, %s31
        %s460 = smul.u32 4, %s31
        %s461 = smul.u32 4, %s31
        %v463 = vld [vmem:[%s457] sm:$0xff]
        %v464 = vld [vmem:[%s457 + $0x8] sm:$0xff]
        %v465 = vld [vmem:[%s457 + $0x10] sm:$0xff]
        %v466 = vld [vmem:[%s457 + $0x18] sm:$0xff]
        %v467 = vpack.c.bf16 %v464, %v463
        %v468 = vpack.c.bf16 %v466, %v465
        %v469 = vld [vmem:[%s1] sm:$0xf]
        %v470 = vld [vmem:[%s1 + $0x4] sm:$0xf]
        %v471 = vld [vmem:[%s1 + $0x8] sm:$0xf]
        %v472 = vld [vmem:[%s1 + $0xc] sm:$0xf]
        %v473 = vld [vmem:[%s2] sm:$0x1]
        %v475 = vlaneseq
        %v476 = vshrl.u32 %v475, 7
        %v477 = vsub.s32 0, %v476
        %v478 = vrot.slane %v473, %v477
        %v484 = vunpack.c.l.b16 %v469
        %v485 = vunpack.c.l.b16 %v470
        %v486 = vunpack.c.l.b16 %v471
        %v487 = vunpack.c.l.b16 %v472
        %v488 = vpack.c.b16 %v485, %v484
        %v489 = vpack.c.b16 %v487, %v486
        %vm492 = vcmask 261120
        %v494 = vsel %vm492, %v467, 0
        %v497 = vsel %vm492, %v468, 0
        %499 = vmatprep.subr.bf16.mxu0 0
        %500 = vmatpush1.bf16.msra.mxu0 %v488
        %501 = vmatprep.subr.bf16.mxu0 0
        %502 = vmatpush1.bf16.msra.mxu0 %v489
        %503 = vmatprep.subr.bf16.mxu0 0
        %504 = vmatpush1.bf16.msra.mxu0 0
        %505 = vmatprep.subr.bf16.mxu0 0
        %506 = vmatpush1.bf16.msra.mxu0 0
        %507 = vmatprep.subr.bf16.mxu0 0
        %508 = vmatpush1.bf16.msra.mxu0 0
        %509 = vmatprep.subr.bf16.mxu0 0
        %510 = vmatpush1.bf16.msra.mxu0 0
        %511 = vmatprep.subr.bf16.mxu0 0
        %512 = vmatpush1.bf16.msra.mxu0 0
        %513 = vmatprep.subr.bf16.mxu0 0
        %514 = vmatpush1.bf16.msra.mxu0 0
        %515 = vmatprep.subr.bf16.mxu0 0
        %516 = vmatpush1.bf16.msra.mxu0 0
        %517 = vmatprep.subr.bf16.mxu0 0
        %518 = vmatpush1.bf16.msra.mxu0 0
        %519 = vmatprep.subr.bf16.mxu0 0
        %520 = vmatpush1.bf16.msra.mxu0 0
        %521 = vmatprep.subr.bf16.mxu0 0
        %522 = vmatpush1.bf16.msra.mxu0 0
        %523 = vmatprep.subr.bf16.mxu0 0
        %524 = vmatpush1.bf16.msra.mxu0 0
        %525 = vmatprep.subr.bf16.mxu0 0
        %526 = vmatpush1.bf16.msra.mxu0 0
        %527 = vmatprep.subr.bf16.mxu0 0
        %528 = vmatpush1.bf16.msra.mxu0 0
        %529 = vmatprep.subr.bf16.mxu0 0
        %530 = vmatpush1.bf16.msra.mxu0 0
        %531 = vmatprep.mubr.bf16.mxu0 0
        %532 = vmatmul.mubr.bf16.gmra.mrb[0].mxu0 %v494
        %v533 = vpop.f32.mrb[0].mxu0
        %v534 = vadd.f32 %v478, %v533
        %v535 = vpop.f32.mrb[0].mxu0
        %v536 = vpop.f32.mrb[0].mxu0
        %v537 = vadd.f32 %v478, %v536
        %v538 = vpop.f32.mrb[0].mxu0
        %539 = vmatprep.mubr.bf16.mxu0 0
        %540 = vmatmul.mubr.bf16.gmra.mrb[0].mxu0 %v497
        %v541 = vpop.f32.mrb[0].mxu0
        %v542 = vadd.f32 %v478, %v541
        %v543 = vpop.f32.mrb[0].mxu0
        %v544 = vpop.f32.mrb[0].mxu0
        %v545 = vadd.f32 %v478, %v544
        %v546 = vpop.f32.mrb[0].mxu0
        %547 = vdwg.mxu0
        %v548 = vmax.f32 %v534, 0.0
        %v549 = vmax.f32 %v537, 0.0
        %v550 = vmax.f32 %v542, 0.0
        %v551 = vmax.f32 %v545, 0.0
        %v552 = vpack.c.bf16 %v549, %v548
        %v553 = vpack.c.bf16 %v551, %v550
        %v554 = vld [vmem:[%s3] sm:$0xff]
        %v555 = vld [vmem:[%s3 + $0x8] sm:$0xff]
        %v556 = vld [vmem:[%s3 + $0x10] sm:$0xff]
        %v557 = vld [vmem:[%s3 + $0x18] sm:$0xff]
        %v558 = vld [vmem:[%s4] sm:$0x3]
        %v560 = vlaneseq
        %v561 = vshrl.u32 %v560, 7
        %v562 = vsub.s32 0, %v561
        %v563 = vrot.slane %v558, %v562
        %v564 = vlaneseq
        %v565 = vshrl.u32 %v564, 7
        %v566 = vsub.s32 1, %v565
        %v567 = vrot.slane %v558, %v566
        %v574 = vunpack.c.l.b16 %v554
        %v575 = vunpack.c.h.b16 %v554
        %v576 = vunpack.c.l.b16 %v555
        %v577 = vunpack.c.h.b16 %v555
        %v578 = vunpack.c.l.b16 %v556
        %v579 = vunpack.c.h.b16 %v556
        %v580 = vunpack.c.l.b16 %v557
        %v581 = vunpack.c.h.b16 %v557
        %v582 = vpack.c.b16 %v576, %v574
        %v583 = vpack.c.b16 %v577, %v575
        %v584 = vpack.c.b16 %v580, %v578
        %v585 = vpack.c.b16 %v581, %v579
        %v591 = vsel %vm492, %v552, 0
        %v594 = vsel %vm492, %v553, 0
        %596 = vmatprep.subr.bf16.mxu0 %v583
        %597 = vmatpush1.bf16.msra.mxu0 %v582
        %598 = vmatprep.subr.bf16.mxu0 %v585
        %599 = vmatpush1.bf16.msra.mxu0 %v584
        %600 = vmatprep.subr.bf16.mxu0 0
        %601 = vmatpush1.bf16.msra.mxu0 0
        %602 = vmatprep.subr.bf16.mxu0 0
        %603 = vmatpush1.bf16.msra.mxu0 0
        %604 = vmatprep.subr.bf16.mxu0 0
        %605 = vmatpush1.bf16.msra.mxu0 0
        %606 = vmatprep.subr.bf16.mxu0 0
        %607 = vmatpush1.bf16.msra.mxu0 0
        %608 = vmatprep.subr.bf16.mxu0 0
        %609 = vmatpush1.bf16.msra.mxu0 0
        %610 = vmatprep.subr.bf16.mxu0 0
        %611 = vmatpush1.bf16.msra.mxu0 0
        %612 = vmatprep.subr.bf16.mxu0 0
        %613 = vmatpush1.bf16.msra.mxu0 0
        %614 = vmatprep.subr.bf16.mxu0 0
        %615 = vmatpush1.bf16.msra.mxu0 0
        %616 = vmatprep.subr.bf16.mxu0 0
        %617 = vmatpush1.bf16.msra.mxu0 0
        %618 = vmatprep.subr.bf16.mxu0 0
        %619 = vmatpush1.bf16.msra.mxu0 0
        %620 = vmatprep.subr.bf16.mxu0 0
        %621 = vmatpush1.bf16.msra.mxu0 0
        %622 = vmatprep.subr.bf16.mxu0 0
        %623 = vmatpush1.bf16.msra.mxu0 0
        %624 = vmatprep.subr.bf16.mxu0 0
        %625 = vmatpush1.bf16.msra.mxu0 0
        %626 = vmatprep.subr.bf16.mxu0 0
        %627 = vmatpush1.bf16.msra.mxu0 0
        %628 = vmatprep.mubr.bf16.mxu0 0
        %629 = vmatmul.mubr.bf16.gmra.mrb[0].mxu0 %v591
        %v630 = vpop.f32.mrb[0].mxu0
        %v631 = vadd.f32 %v563, %v630
        %v632 = vpop.f32.mrb[0].mxu0
        %v633 = vadd.f32 %v567, %v632
        %v634 = vpop.f32.mrb[0].mxu0
        %v635 = vadd.f32 %v563, %v634
        %v636 = vpop.f32.mrb[0].mxu0
        %v637 = vadd.f32 %v567, %v636
        %638 = vmatprep.mubr.bf16.mxu0 0
        %639 = vmatmul.mubr.bf16.gmra.mrb[0].mxu0 %v594
        %v640 = vpop.f32.mrb[0].mxu0
        %v641 = vadd.f32 %v563, %v640
        %v642 = vpop.f32.mrb[0].mxu0
        %v643 = vadd.f32 %v567, %v642
        %v644 = vpop.f32.mrb[0].mxu0
        %v645 = vadd.f32 %v563, %v644
        %v646 = vpop.f32.mrb[0].mxu0
        %v647 = vadd.f32 %v567, %v646
        %648 = vdwg.mxu0
        %649 = vmax.xlane.f32.xlu0 %v633
        %v650 = vpop.xlane.xlu0 %649
        %651 = vmax.xlane.f32.xlu0 %v637
        %v652 = vpop.xlane.xlu0 %651
        %653 = vmax.xlane.f32.xlu0 %v643
        %v654 = vpop.xlane.xlu0 %653
        %655 = vmax.xlane.f32.xlu0 %v647
        %v656 = vpop.xlane.xlu0 %655
        %v657 = vsub.f32 %v633, %v650
        %v658 = vsub.f32 %v637, %v652
        %v659 = vsub.f32 %v643, %v654
        %v660 = vsub.f32 %v647, %v656
        %v661 = vmul.f32 %v657, 1.442695
        %v662 = vpow.pop %v661
        %v663 = vmul.f32 %v658, 1.442695
        %v664 = vpow.pop %v663
        %v665 = vmul.f32 %v659, 1.442695
        %v666 = vpow.pop %v665
        %v667 = vmul.f32 %v660, 1.442695
        %v668 = vpow.pop %v667
        %669 = vadd.xlane.f32.xlu0 %v662
        %v670 = vpop.xlane.xlu0 %669
        %671 = vadd.xlane.f32.xlu0 %v664
        %v672 = vpop.xlane.xlu0 %671
        %673 = vadd.xlane.f32.xlu0 %v666
        %v674 = vpop.xlane.xlu0 %673
        %675 = vadd.xlane.f32.xlu0 %v668
        %v676 = vpop.xlane.xlu0 %675
        %v677 = vrcp.pop %v670
        %v678 = vrcp.pop %v672
        %v679 = vrcp.pop %v674
        %v680 = vrcp.pop %v676
        %v681 = vmul.f32 %v670, %v677
        %v682 = vmul.f32 %v672, %v678
        %v683 = vmul.f32 %v674, %v679
        %v684 = vmul.f32 %v676, %v680
        %v685 = vsub.f32 2.0, %v681
        %v686 = vsub.f32 2.0, %v682
        %v687 = vsub.f32 2.0, %v683
        %v688 = vsub.f32 2.0, %v684
        %v689 = vmul.f32 %v677, %v685
        %v690 = vmul.f32 %v678, %v686
        %v691 = vmul.f32 %v679, %v687
        %v692 = vmul.f32 %v680, %v688
        %v693 = vmul.f32 %v662, %v689
        %v694 = vmul.f32 %v664, %v690
        %v695 = vmul.f32 %v666, %v691
        %v696 = vmul.f32 %v668, %v692
        %v697 = vpack.c.bf16 %v694, %v693
        %v698 = vpack.c.bf16 %v696, %v695
        %v699 = vld [vmem:[%s5] sm:$0xf]
        %v700 = vld [vmem:[%s5 + $0x4] sm:$0xf]
        %v701 = vld [vmem:[%s5 + $0x8] sm:$0xf]
        %v702 = vld [vmem:[%s5 + $0xc] sm:$0xf]
        %v703 = vld [vmem:[%s5 + $0x10] sm:$0xf]
        %v704 = vld [vmem:[%s5 + $0x14] sm:$0xf]
        %v705 = vld [vmem:[%s5 + $0x18] sm:$0xf]
        %v706 = vld [vmem:[%s5 + $0x1c] sm:$0xf]
        %v707 = vld [vmem:[%s5 + $0x20] sm:$0xf]
        %v708 = vld [vmem:[%s5 + $0x24] sm:$0xf]
        %v709 = vld [vmem:[%s5 + $0x28] sm:$0xf]
        %v710 = vld [vmem:[%s5 + $0x2c] sm:$0xf]
        %v711 = vld [vmem:[%s5 + $0x30] sm:$0xf]
        %v712 = vld [vmem:[%s5 + $0x34] sm:$0xf]
        %v713 = vld [vmem:[%s5 + $0x38] sm:$0xf]
        %v714 = vld [vmem:[%s5 + $0x3c] sm:$0xf]
        %v715 = vld [vmem:[%s6] sm:$0x1]
        %v717 = vlaneseq
        %v718 = vshrl.u32 %v717, 7
        %v719 = vsub.s32 0, %v718
        %v720 = vrot.slane %v715, %v719
        %v738 = vunpack.c.l.b16 %v699
        %v739 = vunpack.c.l.b16 %v700
        %v740 = vunpack.c.l.b16 %v701
        %v741 = vunpack.c.l.b16 %v702
        %v742 = vunpack.c.l.b16 %v703
        %v743 = vunpack.c.l.b16 %v704
        %v744 = vunpack.c.l.b16 %v705
        %v745 = vunpack.c.l.b16 %v706
        %v746 = vunpack.c.l.b16 %v707
        %v747 = vunpack.c.l.b16 %v708
        %v748 = vunpack.c.l.b16 %v709
        %v749 = vunpack.c.l.b16 %v710
        %v750 = vunpack.c.l.b16 %v711
        %v751 = vunpack.c.l.b16 %v712
        %v752 = vunpack.c.l.b16 %v713
        %v753 = vunpack.c.l.b16 %v714
        %v754 = vpack.c.b16 %v739, %v738
        %v755 = vpack.c.b16 %v741, %v740
        %v756 = vpack.c.b16 %v743, %v742
        %v757 = vpack.c.b16 %v745, %v744
        %v758 = vpack.c.b16 %v747, %v746
        %v759 = vpack.c.b16 %v749, %v748
        %v760 = vpack.c.b16 %v751, %v750
        %v761 = vpack.c.b16 %v753, %v752
        %770 = vmatprep.subr.bf16.mxu0 0
        %771 = vmatpush1.bf16.msra.mxu0 %v754
        %772 = vmatprep.subr.bf16.mxu0 0
        %773 = vmatpush1.bf16.msra.mxu0 %v755
        %774 = vmatprep.subr.bf16.mxu0 0
        %775 = vmatpush1.bf16.msra.mxu0 %v756
        %776 = vmatprep.subr.bf16.mxu0 0
        %777 = vmatpush1.bf16.msra.mxu0 %v757
        %778 = vmatprep.subr.bf16.mxu0 0
        %779 = vmatpush1.bf16.msra.mxu0 %v758
        %780 = vmatprep.subr.bf16.mxu0 0
        %781 = vmatpush1.bf16.msra.mxu0 %v759
        %782 = vmatprep.subr.bf16.mxu0 0
        %783 = vmatpush1.bf16.msra.mxu0 %v760
        %784 = vmatprep.subr.bf16.mxu0 0
        %785 = vmatpush1.bf16.msra.mxu0 %v761
        %786 = vmatprep.subr.bf16.mxu0 0
        %787 = vmatpush1.bf16.msra.mxu0 0
        %788 = vmatprep.subr.bf16.mxu0 0
        %789 = vmatpush1.bf16.msra.mxu0 0
        %790 = vmatprep.subr.bf16.mxu0 0
        %791 = vmatpush1.bf16.msra.mxu0 0
        %792 = vmatprep.subr.bf16.mxu0 0
        %793 = vmatpush1.bf16.msra.mxu0 0
        %794 = vmatprep.subr.bf16.mxu0 0
        %795 = vmatpush1.bf16.msra.mxu0 0
        %796 = vmatprep.subr.bf16.mxu0 0
        %797 = vmatpush1.bf16.msra.mxu0 0
        %798 = vmatprep.subr.bf16.mxu0 0
        %799 = vmatpush1.bf16.msra.mxu0 0
        %800 = vmatprep.subr.bf16.mxu0 0
        %801 = vmatpush1.bf16.msra.mxu0 0
        %802 = vmatprep.mubr.bf16.mxu0 0
        %803 = vmatmul.mubr.bf16.gmra.mrb[0].mxu0 %v697
        %v804 = vpop.f32.mrb[0].mxu0
        %v805 = vadd.f32 %v720, %v804
        %v806 = vpop.f32.mrb[0].mxu0
        %v807 = vpop.f32.mrb[0].mxu0
        %v808 = vadd.f32 %v720, %v807
        %v809 = vpop.f32.mrb[0].mxu0
        %810 = vmatprep.mubr.bf16.mxu0 0
        %811 = vmatmul.mubr.bf16.gmra.mrb[0].mxu0 %v698
        %v812 = vpop.f32.mrb[0].mxu0
        %v813 = vadd.f32 %v720, %v812
        %v814 = vpop.f32.mrb[0].mxu0
        %v815 = vpop.f32.mrb[0].mxu0
        %v816 = vadd.f32 %v720, %v815
        %v817 = vpop.f32.mrb[0].mxu0
        %818 = vdwg.mxu0
        %819 = vmax.xlane.f32.xlu0 %v805
        %v820 = vpop.xlane.xlu0 %819
        %821 = vmax.xlane.f32.xlu0 %v808
        %v822 = vpop.xlane.xlu0 %821
        %823 = vmax.xlane.f32.xlu0 %v813
        %v824 = vpop.xlane.xlu0 %823
        %825 = vmax.xlane.f32.xlu0 %v816
        %v826 = vpop.xlane.xlu0 %825
        %v827 = vsub.f32 %v805, %v820
        %v828 = vsub.f32 %v808, %v822
        %v829 = vsub.f32 %v813, %v824
        %v830 = vsub.f32 %v816, %v826
        %v831 = vmul.f32 %v827, 1.442695
        %v832 = vpow.pop %v831
        %v833 = vmul.f32 %v828, 1.442695
        %v834 = vpow.pop %v833
        %v835 = vmul.f32 %v829, 1.442695
        %v836 = vpow.pop %v835
        %v837 = vmul.f32 %v830, 1.442695
        %v838 = vpow.pop %v837
        %839 = vadd.xlane.f32.xlu0 %v832
        %v840 = vpop.xlane.xlu0 %839
        %841 = vadd.xlane.f32.xlu0 %v834
        %v842 = vpop.xlane.xlu0 %841
        %843 = vadd.xlane.f32.xlu0 %v836
        %v844 = vpop.xlane.xlu0 %843
        %845 = vadd.xlane.f32.xlu0 %v838
        %v846 = vpop.xlane.xlu0 %845
        %v847 = vrcp.pop %v840
        %v848 = vrcp.pop %v842
        %v849 = vrcp.pop %v844
        %v850 = vrcp.pop %v846
        %v851 = vmul.f32 %v840, %v847
        %v852 = vmul.f32 %v842, %v848
        %v853 = vmul.f32 %v844, %v849
        %v854 = vmul.f32 %v846, %v850
        %v855 = vsub.f32 2.0, %v851
        %v856 = vsub.f32 2.0, %v852
        %v857 = vsub.f32 2.0, %v853
        %v858 = vsub.f32 2.0, %v854
        %v859 = vmul.f32 %v847, %v855
        %v860 = vmul.f32 %v848, %v856
        %v861 = vmul.f32 %v849, %v857
        %v862 = vmul.f32 %v850, %v858
        %v863 = vmul.f32 %v832, %v859
        %v864 = vmul.f32 %v834, %v860
        %v865 = vmul.f32 %v836, %v861
        %v866 = vmul.f32 %v838, %v862
        %v867 = vpack.c.bf16 %v635, %v631
        %v868 = vpack.c.bf16 %v645, %v641
        %v869 = vld [vmem:[%s7] sm:$0xf]
        %v870 = vld [vmem:[%s7 + $0x4] sm:$0xf]
        %v871 = vld [vmem:[%s7 + $0x8] sm:$0xf]
        %v872 = vld [vmem:[%s7 + $0xc] sm:$0xf]
        %v873 = vld [vmem:[%s7 + $0x10] sm:$0xf]
        %v874 = vld [vmem:[%s7 + $0x14] sm:$0xf]
        %v875 = vld [vmem:[%s7 + $0x18] sm:$0xf]
        %v876 = vld [vmem:[%s7 + $0x1c] sm:$0xf]
        %v877 = vld [vmem:[%s7 + $0x20] sm:$0xf]
        %v878 = vld [vmem:[%s7 + $0x24] sm:$0xf]
        %v879 = vld [vmem:[%s7 + $0x28] sm:$0xf]
        %v880 = vld [vmem:[%s7 + $0x2c] sm:$0xf]
        %v881 = vld [vmem:[%s7 + $0x30] sm:$0xf]
        %v882 = vld [vmem:[%s7 + $0x34] sm:$0xf]
        %v883 = vld [vmem:[%s7 + $0x38] sm:$0xf]
        %v884 = vld [vmem:[%s7 + $0x3c] sm:$0xf]
        %v885 = vld [vmem:[%s7 + $0x40] sm:$0xf]
        %v886 = vld [vmem:[%s7 + $0x44] sm:$0xf]
        %v887 = vld [vmem:[%s7 + $0x48] sm:$0xf]
        %v888 = vld [vmem:[%s7 + $0x4c] sm:$0xf]
        %v889 = vld [vmem:[%s7 + $0x50] sm:$0xf]
        %v890 = vld [vmem:[%s7 + $0x54] sm:$0xf]
        %v891 = vld [vmem:[%s7 + $0x58] sm:$0xf]
        %v892 = vld [vmem:[%s7 + $0x5c] sm:$0xf]
        %v893 = vld [vmem:[%s7 + $0x60] sm:$0xf]
        %v894 = vld [vmem:[%s7 + $0x64] sm:$0xf]
        %v895 = vld [vmem:[%s7 + $0x68] sm:$0xf]
        %v896 = vld [vmem:[%s7 + $0x6c] sm:$0xf]
        %v897 = vld [vmem:[%s7 + $0x70] sm:$0xf]
        %v898 = vld [vmem:[%s7 + $0x74] sm:$0xf]
        %v899 = vld [vmem:[%s7 + $0x78] sm:$0xf]
        %v900 = vld [vmem:[%s7 + $0x7c] sm:$0xf]
        %v901 = vld [vmem:[%s8] sm:$0x1]
        %v903 = vlaneseq
        %v904 = vshrl.u32 %v903, 7
        %v905 = vsub.s32 0, %v904
        %v906 = vrot.slane %v901, %v905
        %v940 = vunpack.c.l.b16 %v869
        %v941 = vunpack.c.l.b16 %v870
        %v942 = vunpack.c.l.b16 %v871
        %v943 = vunpack.c.l.b16 %v872
        %v944 = vunpack.c.l.b16 %v873
        %v945 = vunpack.c.l.b16 %v874
        %v946 = vunpack.c.l.b16 %v875
        %v947 = vunpack.c.l.b16 %v876
        %v948 = vunpack.c.l.b16 %v877
        %v949 = vunpack.c.l.b16 %v878
        %v950 = vunpack.c.l.b16 %v879
        %v951 = vunpack.c.l.b16 %v880
        %v952 = vunpack.c.l.b16 %v881
        %v953 = vunpack.c.l.b16 %v882
        %v954 = vunpack.c.l.b16 %v883
        %v955 = vunpack.c.l.b16 %v884
        %v956 = vunpack.c.l.b16 %v885
        %v957 = vunpack.c.l.b16 %v886
        %v958 = vunpack.c.l.b16 %v887
        %v959 = vunpack.c.l.b16 %v888
        %v960 = vunpack.c.l.b16 %v889
        %v961 = vunpack.c.l.b16 %v890
        %v962 = vunpack.c.l.b16 %v891
        %v963 = vunpack.c.l.b16 %v892
        %v964 = vunpack.c.l.b16 %v893
        %v965 = vunpack.c.l.b16 %v894
        %v966 = vunpack.c.l.b16 %v895
        %v967 = vunpack.c.l.b16 %v896
        %v968 = vunpack.c.l.b16 %v897
        %v969 = vunpack.c.l.b16 %v898
        %v970 = vunpack.c.l.b16 %v899
        %v971 = vunpack.c.l.b16 %v900
        %v972 = vpack.c.b16 %v941, %v940
        %v973 = vpack.c.b16 %v943, %v942
        %v974 = vpack.c.b16 %v945, %v944
        %v975 = vpack.c.b16 %v947, %v946
        %v976 = vpack.c.b16 %v949, %v948
        %v977 = vpack.c.b16 %v951, %v950
        %v978 = vpack.c.b16 %v953, %v952
        %v979 = vpack.c.b16 %v955, %v954
        %v980 = vpack.c.b16 %v957, %v956
        %v981 = vpack.c.b16 %v959, %v958
        %v982 = vpack.c.b16 %v961, %v960
        %v983 = vpack.c.b16 %v963, %v962
        %v984 = vpack.c.b16 %v965, %v964
        %v985 = vpack.c.b16 %v967, %v966
        %v986 = vpack.c.b16 %v969, %v968
        %v987 = vpack.c.b16 %v971, %v970
        %1004 = vmatprep.subr.bf16.mxu0 0
        %1005 = vmatpush1.bf16.msra.mxu0 %v972
        %1006 = vmatprep.subr.bf16.mxu0 0
        %1007 = vmatpush1.bf16.msra.mxu0 %v973
        %1008 = vmatprep.subr.bf16.mxu0 0
        %1009 = vmatpush1.bf16.msra.mxu0 %v974
        %1010 = vmatprep.subr.bf16.mxu0 0
        %1011 = vmatpush1.bf16.msra.mxu0 %v975
        %1012 = vmatprep.subr.bf16.mxu0 0
        %1013 = vmatpush1.bf16.msra.mxu0 %v976
        %1014 = vmatprep.subr.bf16.mxu0 0
        %1015 = vmatpush1.bf16.msra.mxu0 %v977
        %1016 = vmatprep.subr.bf16.mxu0 0
        %1017 = vmatpush1.bf16.msra.mxu0 %v978
        %1018 = vmatprep.subr.bf16.mxu0 0
        %1019 = vmatpush1.bf16.msra.mxu0 %v979
        %1020 = vmatprep.subr.bf16.mxu0 0
        %1021 = vmatpush1.bf16.msra.mxu0 %v980
        %1022 = vmatprep.subr.bf16.mxu0 0
        %1023 = vmatpush1.bf16.msra.mxu0 %v981
        %1024 = vmatprep.subr.bf16.mxu0 0
        %1025 = vmatpush1.bf16.msra.mxu0 %v982
        %1026 = vmatprep.subr.bf16.mxu0 0
        %1027 = vmatpush1.bf16.msra.mxu0 %v983
        %1028 = vmatprep.subr.bf16.mxu0 0
        %1029 = vmatpush1.bf16.msra.mxu0 %v984
        %1030 = vmatprep.subr.bf16.mxu0 0
        %1031 = vmatpush1.bf16.msra.mxu0 %v985
        %1032 = vmatprep.subr.bf16.mxu0 0
        %1033 = vmatpush1.bf16.msra.mxu0 %v986
        %1034 = vmatprep.subr.bf16.mxu0 0
        %1035 = vmatpush1.bf16.msra.mxu0 %v987
        %1036 = vmatprep.mubr.bf16.mxu0 %v697
        %1037 = vmatmul.mubr.bf16.gmra.mrb[0].mxu0 %v867
        %v1038 = vpop.f32.mrb[0].mxu0
        %v1039 = vadd.f32 %v906, %v1038
        %v1040 = vpop.f32.mrb[0].mxu0
        %v1041 = vpop.f32.mrb[0].mxu0
        %v1042 = vadd.f32 %v906, %v1041
        %v1043 = vpop.f32.mrb[0].mxu0
        %1044 = vmatprep.mubr.bf16.mxu0 %v698
        %1045 = vmatmul.mubr.bf16.gmra.mrb[0].mxu0 %v868
        %v1046 = vpop.f32.mrb[0].mxu0
        %v1047 = vadd.f32 %v906, %v1046
        %v1048 = vpop.f32.mrb[0].mxu0
        %v1049 = vpop.f32.mrb[0].mxu0
        %v1050 = vadd.f32 %v906, %v1049
        %v1051 = vpop.f32.mrb[0].mxu0
        %1052 = vdwg.mxu0
        %v1053 = vmax.f32 %v1039, 0.0
        %v1054 = vmax.f32 %v1042, 0.0
        %v1055 = vmax.f32 %v1047, 0.0
        %v1056 = vmax.f32 %v1050, 0.0
        %v1057 = vpack.c.bf16 %v1054, %v1053
        %v1058 = vpack.c.bf16 %v1056, %v1055
        %v1059 = vld [vmem:[%s9] sm:$0xf]
        %v1060 = vld [vmem:[%s9 + $0x4] sm:$0xf]
        %v1061 = vld [vmem:[%s9 + $0x8] sm:$0xf]
        %v1062 = vld [vmem:[%s9 + $0xc] sm:$0xf]
        %v1063 = vld [vmem:[%s10] sm:$0x1]
        %v1065 = vlaneseq
        %v1066 = vshrl.u32 %v1065, 7
        %v1067 = vsub.s32 0, %v1066
        %v1068 = vrot.slane %v1063, %v1067
        %v1074 = vunpack.c.l.b16 %v1059
        %v1075 = vunpack.c.l.b16 %v1060
        %v1076 = vunpack.c.l.b16 %v1061
        %v1077 = vunpack.c.l.b16 %v1062
        %v1078 = vpack.c.b16 %v1075, %v1074
        %v1079 = vpack.c.b16 %v1077, %v1076
        %v1083 = vsel %vm492, %v1057, 0
        %v1086 = vsel %vm492, %v1058, 0
        %1088 = vmatprep.subr.bf16.mxu0 0
        %1089 = vmatpush1.bf16.msra.mxu0 %v1078
        %1090 = vmatprep.subr.bf16.mxu0 0
        %1091 = vmatpush1.bf16.msra.mxu0 %v1079
        %1092 = vmatprep.subr.bf16.mxu0 0
        %1093 = vmatpush1.bf16.msra.mxu0 0
        %1094 = vmatprep.subr.bf16.mxu0 0
        %1095 = vmatpush1.bf16.msra.mxu0 0
        %1096 = vmatprep.subr.bf16.mxu0 0
        %1097 = vmatpush1.bf16.msra.mxu0 0
        %1098 = vmatprep.subr.bf16.mxu0 0
        %1099 = vmatpush1.bf16.msra.mxu0 0
        %1100 = vmatprep.subr.bf16.mxu0 0
        %1101 = vmatpush1.bf16.msra.mxu0 0
        %1102 = vmatprep.subr.bf16.mxu0 0
        %1103 = vmatpush1.bf16.msra.mxu0 0
        %1104 = vmatprep.subr.bf16.mxu0 0
        %1105 = vmatpush1.bf16.msra.mxu0 0
        %1106 = vmatprep.subr.bf16.mxu0 0
        %1107 = vmatpush1.bf16.msra.mxu0 0
        %1108 = vmatprep.subr.bf16.mxu0 0
        %1109 = vmatpush1.bf16.msra.mxu0 0
        %1110 = vmatprep.subr.bf16.mxu0 0
        %1111 = vmatpush1.bf16.msra.mxu0 0
        %1112 = vmatprep.subr.bf16.mxu0 0
        %1113 = vmatpush1.bf16.msra.mxu0 0
        %1114 = vmatprep.subr.bf16.mxu0 0
        %1115 = vmatpush1.bf16.msra.mxu0 0
        %1116 = vmatprep.subr.bf16.mxu0 0
        %1117 = vmatpush1.bf16.msra.mxu0 0
        %1118 = vmatprep.subr.bf16.mxu0 0
        %1119 = vmatpush1.bf16.msra.mxu0 0
        %1120 = vmatprep.mubr.bf16.mxu0 0
        %1121 = vmatmul.mubr.bf16.gmra.mrb[0].mxu0 %v1083
        %v1122 = vpop.f32.mrb[0].mxu0
        %v1123 = vadd.f32 %v1068, %v1122
        %v1124 = vpop.f32.mrb[0].mxu0
        %v1125 = vpop.f32.mrb[0].mxu0
        %v1126 = vadd.f32 %v1068, %v1125
        %v1127 = vpop.f32.mrb[0].mxu0
        %1128 = vmatprep.mubr.bf16.mxu0 0
        %1129 = vmatmul.mubr.bf16.gmra.mrb[0].mxu0 %v1086
        %v1130 = vpop.f32.mrb[0].mxu0
        %v1131 = vadd.f32 %v1068, %v1130
        %v1132 = vpop.f32.mrb[0].mxu0
        %v1133 = vpop.f32.mrb[0].mxu0
        %v1134 = vadd.f32 %v1068, %v1133
        %v1135 = vpop.f32.mrb[0].mxu0
        %1136 = vdwg.mxu0
        %v1137 = vmax.f32 %v1123, 0.0
        %v1138 = vmax.f32 %v1126, 0.0
        %v1139 = vmax.f32 %v1131, 0.0
        %v1140 = vmax.f32 %v1134, 0.0
        %1141 = vst [vmem:[%s438] sm:$0xff] %v1137
        %1142 = vst [vmem:[%s438 + $0x8] sm:$0xff] %v1138
        %1143 = vst [vmem:[%s438 + $0x10] sm:$0xff] %v1139
        %1144 = vst [vmem:[%s438 + $0x18] sm:$0xff] %v1140
        %1145 = vst [vmem:[%s445] sm:$0xff] %v631
        %1146 = vst [vmem:[%s445 + $0x8] sm:$0xff] %v635
        %1147 = vst [vmem:[%s445 + $0x10] sm:$0xff] %v641
        %1148 = vst [vmem:[%s445 + $0x18] sm:$0xff] %v645
        %1149 = vst [vmem:[%s452] sm:$0xff] %v863
        %1150 = vst [vmem:[%s452 + $0x8] sm:$0xff] %v864
        %1151 = vst [vmem:[%s452 + $0x10] sm:$0xff] %v865
        %1152 = vst [vmem:[%s452 + $0x18] sm:$0xff] %v866
        %s1153 = sand.u32 %s275, 1
        %s1154 = scalar_lea.sflag [#allocation3], %s1153
        %s1155 = sand.u32 %s275, 1
        %s1156 = smul.addr %s1155, 32
        %s1157 = scalar_lea.vmem [#allocation2], %s1156
        %s1158 = sand.u32 %s31, 1
        %s1159 = scalar_lea.sflag [#allocation5], %s1158
        %s1160 = sand.u32 %s301, 1
        %s1161 = smul.addr %s1160, 32
        %s1162 = scalar_lea.vmem [#allocation4], %s1161
        %s1163 = sand.u32 %s31, 1
        %s1164 = scalar_lea.sflag [#allocation5], %s1163
        %s1165 = sand.u32 %s327, 1
        %s1166 = smul.addr %s1165, 32
        %s1167 = scalar_lea.vmem [#allocation6], %s1166
        // Predicated region
        $region65: #{tpu_custom_call.1} parent=63 // pred_check
          %p1168 = pneg %p285
        $region66: #{tpu_custom_call.1} parent=63 // pred_check_branch
          %1170 = sbr.rel (%p1168) target = $region68
        $region67: #{tpu_custom_call.1} parent=63 // pred_region
          %s1171 = smul.u32 4, %s31
          %s1173 = ssub.s32 512, 512
          %1174 = vsyncadd %s1154, %s1173
          %s1175 = smul.addr %s1171, 128
          %s1176 = scalar_lea.hbm %s11, %s1175
          %s1177 = sshll.u32 %s1157, 4
          %s1178 = int_to_ptr.vmem [resolvable:$true] %s1177
          %1183 = dma.vmem_to_hbm [thread:$0]  %s1178, 512, %s1176, %s1154, 128, 128, 8
        $region68: #{tpu_custom_call.1} parent=63 // pred_fallthru
          _
        // Predicated region
        $region69: #{tpu_custom_call.1} parent=63 // pred_check
          %p1184 = pneg %p311
        $region70: #{tpu_custom_call.1} parent=63 // pred_check_branch
          %1186 = sbr.rel (%p1184) target = $region72
        $region71: #{tpu_custom_call.1} parent=63 // pred_region
          %s1187 = smul.u32 4, %s31
          %s1189 = ssub.s32 512, 512
          %1190 = vsyncadd %s1159, %s1189
          %s1191 = smul.addr %s1187, 128
          %s1192 = scalar_lea.hbm %s12, %s1191
          %s1193 = sshll.u32 %s1162, 4
          %s1194 = int_to_ptr.vmem [resolvable:$true] %s1193
          %1199 = dma.vmem_to_hbm [thread:$0]  %s1194, 512, %s1192, %s1159, 128, 128, 8
        $region72: #{tpu_custom_call.1} parent=63 // pred_fallthru
          _
        // Predicated region
        $region73: #{tpu_custom_call.1} parent=63 // pred_check
          %p1200 = pneg %p337
        $region74: #{tpu_custom_call.1} parent=63 // pred_check_branch
          %1202 = sbr.rel (%p1200) target = $region76
        $region75: #{tpu_custom_call.1} parent=63 // pred_region
          %s1203 = smul.u32 4, %s31
          %s1205 = ssub.s32 512, 512
          %1206 = vsyncadd %s1164, %s1205
          %s1207 = smul.addr %s1203, 128
          %s1208 = scalar_lea.hbm %s13, %s1207
          %s1209 = sshll.u32 %s1167, 4
          %s1210 = int_to_ptr.vmem [resolvable:$true] %s1209
          %1215 = dma.vmem_to_hbm [thread:$0]  %s1210, 512, %s1208, %s1164, 128, 128, 8
        $region76: #{tpu_custom_call.1} parent=63 // pred_fallthru
          _
      $region64: #{tpu_custom_call.1} parent=5 // pred_fallthru
        _
      %p1216 = scmp.le.s32.totalorder 2, %s26
      // Predicated region
      $region77: #{tpu_custom_call.1} parent=5 // pred_check
        %p1217 = pneg %p1216
      $region78: #{tpu_custom_call.1} parent=5 // pred_check_branch
        %1219 = sbr.rel (%p1217) target = $region80
      $region79: #{tpu_custom_call.1} parent=5 // pred_region
        %s1220 = ssub.s32 %s26, 2
        // Predicated region
        $region81: #{tpu_custom_call.1} parent=79 // pred_check
          %p1221 = pneg %p291
        $region82: #{tpu_custom_call.1} parent=79 // pred_check_branch
          %1223 = sbr.rel (%p1221) target = $region84
        $region83: #{tpu_custom_call.1} parent=79 // pred_region
          %s1224 = sand.u32 %s276, 1
          %s1225 = scalar_lea.sflag [#allocation3], %s1224
          %s1226 = sand.u32 %s276, 1
          %s1227 = smul.addr %s1226, 32
          %s1228 = scalar_lea.vmem [#allocation2], %s1227
          %1229 = dma.done %s1225, 512
        $region84: #{tpu_custom_call.1} parent=79 // pred_fallthru
          _
        // Predicated region
        $region85: #{tpu_custom_call.1} parent=79 // pred_check
          %p1230 = pneg %p317
        $region86: #{tpu_custom_call.1} parent=79 // pred_check_branch
          %1232 = sbr.rel (%p1230) target = $region88
        $region87: #{tpu_custom_call.1} parent=79 // pred_region
          %s1233 = sand.u32 %s32, 1
          %s1234 = scalar_lea.sflag [#allocation5], %s1233
          %s1235 = sand.u32 %s302, 1
          %s1236 = smul.addr %s1235, 32
          %s1237 = scalar_lea.vmem [#allocation4], %s1236
          %1238 = dma.done %s1234, 512
        $region88: #{tpu_custom_call.1} parent=79 // pred_fallthru
          _
        // Predicated region
        $region89: #{tpu_custom_call.1} parent=79 // pred_check
          %p1239 = pneg %p343
        $region90: #{tpu_custom_call.1} parent=79 // pred_check_branch
          %1241 = sbr.rel (%p1239) target = $region92
        $region91: #{tpu_custom_call.1} parent=79 // pred_region
          %s1242 = sand.u32 %s32, 1
          %s1243 = scalar_lea.sflag [#allocation5], %s1242
          %s1244 = sand.u32 %s328, 1
          %s1245 = smul.addr %s1244, 32
          %s1246 = scalar_lea.vmem [#allocation6], %s1245
          %1247 = dma.done %s1243, 512
        $region92: #{tpu_custom_call.1} parent=79 // pred_fallthru
          _
      $region80: #{tpu_custom_call.1} parent=5 // pred_fallthru
        _
    $region6: #{tpu_custom_call.1} parent=1 // loop_footer
      %s30 = sadd.s32 1, %s26
    $region7: #{tpu_custom_call.1} parent=1 // loop_footer_branch
      %25 = sbr.rel target = $region3
    $region8: #{tpu_custom_call.1} parent=1 // loop_exit
      _
    %1248 = vsyncpa [#allocation3], 1
    %s1249 = scalar_lea.sflag [#allocation3], 1
    %1250 = vsyncpa %s1249, 1
    %1251 = vsyncpa [#allocation5], 1
    %s1252 = scalar_lea.sflag [#allocation5], 1
    %1253 = vsyncpa %s1252, 1

</llo_original>
